<compile_context>
chip_gen: v6e
topology: v6e:2x2x1
jax: 0.10.0
libtpu: 0.0.40
codegen_flags: <defaults>
</compile_context>

<pallas_src>
import math
import functools

import jax
import jax.numpy as jnp
from jax import lax
from jax.experimental import pallas as pl
from jax.experimental.pallas import tpu as pltpu

EPS = 1e-5
# tap order: kh-major, kw-minor  ->  tap index t = kh*3 + kw, (dh, dw) = (kh-1, kw-1)
TAPS = tuple((dh, dw) for dh in (-1, 0, 1) for dw in (-1, 0, 1))


def _bn_train(y, gamma, beta, inv_n):
    """Single-pass training-mode BN over the lane (pixel) axis of (C, NHW)."""
    s = jnp.sum(y, axis=1, keepdims=True)
    ss = jnp.sum(y * y, axis=1, keepdims=True)
    mean = s * inv_n
    var = ss * inv_n - mean * mean          # biased variance (PyTorch training)
    return (y - mean) * lax.rsqrt(var + EPS) * gamma + beta


def _build_im2col(act, mask_ref, slab_ref, C, W, NHW):
    """slab[t*C + c, p] = act[c, p + dh*W + dw] if (h+dh, w+dw) in-bounds else 0.

    The spatial 3x3 shifts are lane rolls of the flattened (n, h, w) axis;
    out-of-image taps are zeroed with a precomputed per-tap mask (this also
    covers the roll wrap-around, since every wrapped lane is out-of-bounds).
    """
    for t, (dh, dw) in enumerate(TAPS):
        delta = dh * W + dw
        if delta == 0:
            blk = act
        else:
            blk = pltpu.roll(act, shift=(-delta) % NHW, axis=1)
            blk = blk * mask_ref[t:t + 1, :]
        slab_ref[t * C:(t + 1) * C, :] = blk


def basic_block_kernel(x_ref, m_ref, w1_ref, w2_ref, g1_ref, b1_ref,
                       g2_ref, b2_ref, o_ref, slab1_ref, slab2_ref, *, W):
    Cin, NHW = x_ref.shape
    Cout = w1_ref.shape[0]
    inv_n = 1.0 / float(NHW)

    x = x_ref[...]                                        # (Cin, NHW), residual too

    # ---- conv1: one (Cout, 9*Cin) @ (9*Cin, NHW) matmul -------------------
    _build_im2col(x, m_ref, slab1_ref, Cin, W, NHW)
    out1 = jnp.dot(w1_ref[...], slab1_ref[...],
                   preferred_element_type=jnp.float32)    # (Cout, NHW)
    act1 = jnp.maximum(_bn_train(out1, g1_ref[...], b1_ref[...], inv_n), 0.0)

    # ---- conv2: one (Cin, 9*Cout) @ (9*Cout, NHW) matmul ------------------
    _build_im2col(act1, m_ref, slab2_ref, Cout, W, NHW)
    out2 = jnp.dot(w2_ref[...], slab2_ref[...],
                   preferred_element_type=jnp.float32)    # (Cin, NHW)
    out2 = _bn_train(out2, g2_ref[...], b2_ref[...], inv_n) + x
    o_ref[...] = jnp.maximum(out2, 0.0)


def basic_block_forward(x_nchw, w1, w2, g1, b1, g2, b2):
    """x_nchw: (N, Cin, H, W); w1: (Cout, Cin, 3, 3); w2: (Cin, Cout, 3, 3)."""
    N, Cin, H, W = x_nchw.shape
    Cout = w1.shape[0]
    NHW = N * H * W
    f32 = jnp.float32

    # activations: (C, N*H*W) = channel-on-sublane, pixel-on-lane (lane dense)
    x_t = jnp.transpose(x_nchw, (1, 0, 2, 3)).reshape(Cin, NHW).astype(f32)

    # weights: OIHW -> (O, kh, kw, I) -> (O, 9*I), matching slab row order t*I + i
    w1m = jnp.transpose(w1, (0, 2, 3, 1)).reshape(Cout, 9 * Cin).astype(f32)
    w2m = jnp.transpose(w2, (0, 2, 3, 1)).reshape(Cin, 9 * Cout).astype(f32)

    g1r = g1.reshape(Cout, 1).astype(f32)
    b1r = b1.reshape(Cout, 1).astype(f32)
    g2r = g2.reshape(Cin, 1).astype(f32)
    b2r = b2.reshape(Cin, 1).astype(f32)

    # per-tap zero-padding masks over the flattened (n, h, w) lane axis
    pix = jnp.arange(NHW, dtype=jnp.int32) % (H * W)
    hh = pix // W
    ww = pix % W
    mask9 = jnp.stack(
        [((hh + dh >= 0) & (hh + dh < H) & (ww + dw >= 0) & (ww + dw < W))
         for dh, dw in TAPS], axis=0).astype(f32)          # (9, NHW)

    vmem = pl.BlockSpec(memory_space=pltpu.MemorySpace.VMEM)
    cost = pl.CostEstimate(
        flops=int(2 * NHW * 9 * Cin * Cout * 2 + 12 * NHW * (Cin + Cout)),
        transcendentals=int(Cin + Cout),
        bytes_accessed=int(4 * (2 * Cin * NHW + 9 * NHW + 18 * Cin * Cout
                                + 2 * (Cin + Cout))))

    out_t = pl.pallas_call(
        functools.partial(basic_block_kernel, W=W),
        out_shape=jax.ShapeDtypeStruct((Cin, NHW), f32),
        in_specs=[vmem] * 8,
        out_specs=vmem,
        scratch_shapes=[
            pltpu.VMEM((9 * Cin, NHW), f32),    # conv1 im2col slab
            pltpu.VMEM((9 * Cout, NHW), f32),   # conv2 im2col slab
        ],
        cost_estimate=cost,
    )(x_t, mask9, w1m, w2m, g1r, b1r, g2r, b2r)

    # (Cin, N*H*W) -> NCHW
    return jnp.transpose(out_t.reshape(Cin, N, H, W), (1, 0, 2, 3))


def reference_forward(x, w1, w2, g1, b1, g2, b2):
    """Pure-JAX reference (NCHW), mirrors the PyTorch forward."""
    def conv(x, w):
        return lax.conv_general_dilated(
            x, w, window_strides=(1, 1), padding=((1, 1), (1, 1)),
            dimension_numbers=("NCHW", "OIHW", "NCHW"))

    def bn(x, g, b):
        mean = jnp.mean(x, axis=(0, 2, 3), keepdims=True)
        var = jnp.mean((x - mean) ** 2, axis=(0, 2, 3), keepdims=True)
        return ((x - mean) * lax.rsqrt(var + EPS)
                * g.reshape(1, -1, 1, 1) + b.reshape(1, -1, 1, 1))

    out = jax.nn.relu(bn(conv(x, w1), g1, b1))
    out = bn(conv(out, w2), g2, b2) + x
    return jax.nn.relu(out)


if __name__ == "__main__":
    N, Cin, Cout, H, W = 2, 4, 8, 16, 16   # inplanes=4, outplanes=8, stride=1

    key = jax.random.PRNGKey(0)
    kx, k1, k2 = jax.random.split(key, 3)

    x = jax.random.normal(kx, (N, Cin, H, W), dtype=jnp.float32)

    # weight_init: Conv2d weight ~ N(0, sqrt(2 / (kh*kw*out_channels)))
    std1 = math.sqrt(2.0 / (3 * 3 * Cout))
    std2 = math.sqrt(2.0 / (3 * 3 * Cin))
    w1 = std1 * jax.random.normal(k1, (Cout, Cin, 3, 3), dtype=jnp.float32)
    w2 = std2 * jax.random.normal(k2, (Cin, Cout, 3, 3), dtype=jnp.float32)

    # weight_init: BatchNorm2d weight=1, bias=0
    g1 = jnp.ones((Cout,), jnp.float32)
    b1 = jnp.zeros((Cout,), jnp.float32)
    g2 = jnp.ones((Cin,), jnp.float32)
    b2 = jnp.zeros((Cin,), jnp.float32)

    out = jax.block_until_ready(basic_block_forward(x, w1, w2, g1, b1, g2, b2))
    ref = jax.block_until_ready(reference_forward(x, w1, w2, g1, b1, g2, b2))

    assert out.shape == (N, Cin, H, W)
    assert jnp.allclose(out, ref, atol=2e-3, rtol=2e-3)

    print("KERNEL_OK")
</pallas_src>

<mosaic_0001>
module attributes {stable_mosaic.version = 11 : i64} {
  func.func @basic_block_kernel(%arg0: memref<4x512xf32, #tpu.memory_space<vmem>>, %arg1: memref<9x512xf32, #tpu.memory_space<vmem>>, %arg2: memref<8x36xf32, #tpu.memory_space<vmem>>, %arg3: memref<4x72xf32, #tpu.memory_space<vmem>>, %arg4: memref<8x1xf32, #tpu.memory_space<vmem>>, %arg5: memref<8x1xf32, #tpu.memory_space<vmem>>, %arg6: memref<4x1xf32, #tpu.memory_space<vmem>>, %arg7: memref<4x1xf32, #tpu.memory_space<vmem>>, %arg8: memref<4x512xf32, #tpu.memory_space<vmem>>, %arg9: memref<36x512xf32, #tpu.memory_space<vmem>>, %arg10: memref<72x512xf32, #tpu.memory_space<vmem>>) attributes {dimension_semantics = [], scalar_prefetch = 0 : i64, scratch_operands = 2 : i64, tpu.core_type = #tpu.core_type<tc>} {
    %c0 = arith.constant 0 : index
    %c0_0 = arith.constant 0 : index
    %0 = vector.load %arg0[%c0, %c0_0] : memref<4x512xf32, #tpu.memory_space<vmem>>, vector<4x512xf32>
    %c17_i32 = arith.constant 17 : i32
    %1 = tpu.dynamic_rotate %0 by %c17_i32 dim 1 : vector<4x512xf32>, i32 -> vector<4x512xf32>
    %c0_1 = arith.constant 0 : index
    %c0_2 = arith.constant 0 : index
    %2 = vector.load %arg1[%c0_1, %c0_2] : memref<9x512xf32, #tpu.memory_space<vmem>>, vector<1x512xf32>
    %3 = vector.broadcast %2 : vector<1x512xf32> to vector<4x512xf32>
    %4 = arith.mulf %1, %3 : vector<4x512xf32>
    %c0_3 = arith.constant 0 : index
    %c0_4 = arith.constant 0 : index
    %5 = vector.load %arg9[%c0_3, %c0_4] : memref<36x512xf32, #tpu.memory_space<vmem>>, vector<4x512xf32>
    tpu.vector_store %arg9[%c0_3, %c0_4], %4 {strides = array<i32>} : memref<36x512xf32, #tpu.memory_space<vmem>>, vector<4x512xf32>,
    %c16_i32 = arith.constant 16 : i32
    %6 = tpu.dynamic_rotate %0 by %c16_i32 dim 1 : vector<4x512xf32>, i32 -> vector<4x512xf32>
    %c1 = arith.constant 1 : index
    %c0_5 = arith.constant 0 : index
    %7 = vector.load %arg1[%c1, %c0_5] : memref<9x512xf32, #tpu.memory_space<vmem>>, vector<1x512xf32>
    %8 = vector.broadcast %7 : vector<1x512xf32> to vector<4x512xf32>
    %9 = arith.mulf %6, %8 : vector<4x512xf32>
    %c4 = arith.constant 4 : index
    %c0_6 = arith.constant 0 : index
    %10 = vector.load %arg9[%c4, %c0_6] : memref<36x512xf32, #tpu.memory_space<vmem>>, vector<4x512xf32>
    tpu.vector_store %arg9[%c4, %c0_6], %9 {strides = array<i32>} : memref<36x512xf32, #tpu.memory_space<vmem>>, vector<4x512xf32>,
    %c15_i32 = arith.constant 15 : i32
    %11 = tpu.dynamic_rotate %0 by %c15_i32 dim 1 : vector<4x512xf32>, i32 -> vector<4x512xf32>
    %c2 = arith.constant 2 : index
    %c0_7 = arith.constant 0 : index
    %12 = vector.load %arg1[%c2, %c0_7] : memref<9x512xf32, #tpu.memory_space<vmem>>, vector<1x512xf32>
    %13 = vector.broadcast %12 : vector<1x512xf32> to vector<4x512xf32>
    %14 = arith.mulf %11, %13 : vector<4x512xf32>
    %c8 = arith.constant 8 : index
    %c0_8 = arith.constant 0 : index
    %15 = vector.load %arg9[%c8, %c0_8] : memref<36x512xf32, #tpu.memory_space<vmem>>, vector<4x512xf32>
    tpu.vector_store %arg9[%c8, %c0_8], %14 {strides = array<i32>} : memref<36x512xf32, #tpu.memory_space<vmem>>, vector<4x512xf32>,
    %c1_i32 = arith.constant 1 : i32
    %16 = tpu.dynamic_rotate %0 by %c1_i32 dim 1 : vector<4x512xf32>, i32 -> vector<4x512xf32>
    %c3 = arith.constant 3 : index
    %c0_9 = arith.constant 0 : index
    %17 = vector.load %arg1[%c3, %c0_9] : memref<9x512xf32, #tpu.memory_space<vmem>>, vector<1x512xf32>
    %18 = vector.broadcast %17 : vector<1x512xf32> to vector<4x512xf32>
    %19 = arith.mulf %16, %18 : vector<4x512xf32>
    %c12 = arith.constant 12 : index
    %c0_10 = arith.constant 0 : index
    %20 = vector.load %arg9[%c12, %c0_10] : memref<36x512xf32, #tpu.memory_space<vmem>>, vector<4x512xf32>
    tpu.vector_store %arg9[%c12, %c0_10], %19 {strides = array<i32>} : memref<36x512xf32, #tpu.memory_space<vmem>>, vector<4x512xf32>,
    %c16 = arith.constant 16 : index
    %c0_11 = arith.constant 0 : index
    %21 = vector.load %arg9[%c16, %c0_11] : memref<36x512xf32, #tpu.memory_space<vmem>>, vector<4x512xf32>
    tpu.vector_store %arg9[%c16, %c0_11], %0 {strides = array<i32>} : memref<36x512xf32, #tpu.memory_space<vmem>>, vector<4x512xf32>,
    %c511_i32 = arith.constant 511 : i32
    %22 = tpu.dynamic_rotate %0 by %c511_i32 dim 1 : vector<4x512xf32>, i32 -> vector<4x512xf32>
    %c5 = arith.constant 5 : index
    %c0_12 = arith.constant 0 : index
    %23 = vector.load %arg1[%c5, %c0_12] : memref<9x512xf32, #tpu.memory_space<vmem>>, vector<1x512xf32>
    %24 = vector.broadcast %23 : vector<1x512xf32> to vector<4x512xf32>
    %25 = arith.mulf %22, %24 : vector<4x512xf32>
    %c20 = arith.constant 20 : index
    %c0_13 = arith.constant 0 : index
    %26 = vector.load %arg9[%c20, %c0_13] : memref<36x512xf32, #tpu.memory_space<vmem>>, vector<4x512xf32>
    tpu.vector_store %arg9[%c20, %c0_13], %25 {strides = array<i32>} : memref<36x512xf32, #tpu.memory_space<vmem>>, vector<4x512xf32>,
    %c497_i32 = arith.constant 497 : i32
    %27 = tpu.dynamic_rotate %0 by %c497_i32 dim 1 : vector<4x512xf32>, i32 -> vector<4x512xf32>
    %c6 = arith.constant 6 : index
    %c0_14 = arith.constant 0 : index
    %28 = vector.load %arg1[%c6, %c0_14] : memref<9x512xf32, #tpu.memory_space<vmem>>, vector<1x512xf32>
    %29 = vector.broadcast %28 : vector<1x512xf32> to vector<4x512xf32>
    %30 = arith.mulf %27, %29 : vector<4x512xf32>
    %c24 = arith.constant 24 : index
    %c0_15 = arith.constant 0 : index
    %31 = vector.load %arg9[%c24, %c0_15] : memref<36x512xf32, #tpu.memory_space<vmem>>, vector<4x512xf32>
    tpu.vector_store %arg9[%c24, %c0_15], %30 {strides = array<i32>} : memref<36x512xf32, #tpu.memory_space<vmem>>, vector<4x512xf32>,
    %c496_i32 = arith.constant 496 : i32
    %32 = tpu.dynamic_rotate %0 by %c496_i32 dim 1 : vector<4x512xf32>, i32 -> vector<4x512xf32>
    %c7 = arith.constant 7 : index
    %c0_16 = arith.constant 0 : index
    %33 = vector.load %arg1[%c7, %c0_16] : memref<9x512xf32, #tpu.memory_space<vmem>>, vector<1x512xf32>
    %34 = vector.broadcast %33 : vector<1x512xf32> to vector<4x512xf32>
    %35 = arith.mulf %32, %34 : vector<4x512xf32>
    %c28 = arith.constant 28 : index
    %c0_17 = arith.constant 0 : index
    %36 = vector.load %arg9[%c28, %c0_17] : memref<36x512xf32, #tpu.memory_space<vmem>>, vector<4x512xf32>
    tpu.vector_store %arg9[%c28, %c0_17], %35 {strides = array<i32>} : memref<36x512xf32, #tpu.memory_space<vmem>>, vector<4x512xf32>,
    %c495_i32 = arith.constant 495 : i32
    %37 = tpu.dynamic_rotate %0 by %c495_i32 dim 1 : vector<4x512xf32>, i32 -> vector<4x512xf32>
    %c8_18 = arith.constant 8 : index
    %c0_19 = arith.constant 0 : index
    %38 = vector.load %arg1[%c8_18, %c0_19] : memref<9x512xf32, #tpu.memory_space<vmem>>, vector<1x512xf32>
    %39 = vector.broadcast %38 : vector<1x512xf32> to vector<4x512xf32>
    %40 = arith.mulf %37, %39 : vector<4x512xf32>
    %c32 = arith.constant 32 : index
    %c0_20 = arith.constant 0 : index
    %41 = vector.load %arg9[%c32, %c0_20] : memref<36x512xf32, #tpu.memory_space<vmem>>, vector<4x512xf32>
    tpu.vector_store %arg9[%c32, %c0_20], %40 {strides = array<i32>} : memref<36x512xf32, #tpu.memory_space<vmem>>, vector<4x512xf32>,
    %c0_21 = arith.constant 0 : index
    %c0_22 = arith.constant 0 : index
    %42 = vector.load %arg2[%c0_21, %c0_22] : memref<8x36xf32, #tpu.memory_space<vmem>>, vector<8x36xf32>
    %c0_23 = arith.constant 0 : index
    %c0_24 = arith.constant 0 : index
    %43 = vector.load %arg9[%c0_23, %c0_24] : memref<36x512xf32, #tpu.memory_space<vmem>>, vector<36x512xf32>
    %cst = arith.constant dense<0.000000e+00> : vector<8x512xf32>
    %44 = tpu.matmul %42, %43, %cst {dimension_numbers = #tpu.dot_dimension_numbers<[1], [0], [0], [1], [0, 0, 1, 1], [], []>} : vector<8x36xf32>, vector<36x512xf32>, vector<8x512xf32> -> vector<8x512xf32>
    %c0_25 = arith.constant 0 : index
    %c0_26 = arith.constant 0 : index
    %45 = vector.load %arg4[%c0_25, %c0_26] : memref<8x1xf32, #tpu.memory_space<vmem>>, vector<8x1xf32>
    %c0_27 = arith.constant 0 : index
    %c0_28 = arith.constant 0 : index
    %46 = vector.load %arg5[%c0_27, %c0_28] : memref<8x1xf32, #tpu.memory_space<vmem>>, vector<8x1xf32>
    %cst_29 = arith.constant dense<0.000000e+00> : vector<8xf32>
    %47 = vector.multi_reduction <add>, %44, %cst_29 [1] : vector<8x512xf32> to vector<8xf32>
    %48 = vector.shape_cast %47 : vector<8xf32> to vector<8x1xf32>
    %49 = arith.mulf %44, %44 : vector<8x512xf32>
    %cst_30 = arith.constant dense<0.000000e+00> : vector<8xf32>
    %50 = vector.multi_reduction <add>, %49, %cst_30 [1] : vector<8x512xf32> to vector<8xf32>
    %51 = vector.shape_cast %50 : vector<8xf32> to vector<8x1xf32>
    %cst_31 = arith.constant 0.001953125 : f32
    %52 = vector.broadcast %cst_31 : f32 to vector<8x1xf32>
    %53 = arith.mulf %48, %52 : vector<8x1xf32>
    %cst_32 = arith.constant 0.001953125 : f32
    %54 = vector.broadcast %cst_32 : f32 to vector<8x1xf32>
    %55 = arith.mulf %51, %54 : vector<8x1xf32>
    %56 = arith.mulf %53, %53 : vector<8x1xf32>
    %57 = arith.subf %55, %56 : vector<8x1xf32>
    %58 = vector.broadcast %53 : vector<8x1xf32> to vector<8x512xf32>
    %59 = arith.subf %44, %58 : vector<8x512xf32>
    %cst_33 = arith.constant 9.99999974E-6 : f32
    %60 = vector.broadcast %cst_33 : f32 to vector<8x1xf32>
    %61 = arith.addf %57, %60 : vector<8x1xf32>
    %62 = math.rsqrt %61 : vector<8x1xf32>
    %63 = vector.broadcast %62 : vector<8x1xf32> to vector<8x512xf32>
    %64 = arith.mulf %59, %63 : vector<8x512xf32>
    %65 = vector.broadcast %45 : vector<8x1xf32> to vector<8x512xf32>
    %66 = arith.mulf %64, %65 : vector<8x512xf32>
    %67 = vector.broadcast %46 : vector<8x1xf32> to vector<8x512xf32>
    %68 = arith.addf %66, %67 : vector<8x512xf32>
    %cst_34 = arith.constant 0.000000e+00 : f32
    %69 = vector.broadcast %cst_34 : f32 to vector<8x512xf32>
    %70 = arith.maximumf %68, %69 : vector<8x512xf32>
    %c17_i32_35 = arith.constant 17 : i32
    %71 = tpu.dynamic_rotate %70 by %c17_i32_35 dim 1 : vector<8x512xf32>, i32 -> vector<8x512xf32>
    %c0_36 = arith.constant 0 : index
    %c0_37 = arith.constant 0 : index
    %72 = vector.load %arg1[%c0_36, %c0_37] : memref<9x512xf32, #tpu.memory_space<vmem>>, vector<1x512xf32>
    %73 = vector.broadcast %72 : vector<1x512xf32> to vector<8x512xf32>
    %74 = arith.mulf %71, %73 : vector<8x512xf32>
    %c0_38 = arith.constant 0 : index
    %c0_39 = arith.constant 0 : index
    %75 = vector.load %arg10[%c0_38, %c0_39] : memref<72x512xf32, #tpu.memory_space<vmem>>, vector<8x512xf32>
    tpu.vector_store %arg10[%c0_38, %c0_39], %74 {strides = array<i32>} : memref<72x512xf32, #tpu.memory_space<vmem>>, vector<8x512xf32>,
    %c16_i32_40 = arith.constant 16 : i32
    %76 = tpu.dynamic_rotate %70 by %c16_i32_40 dim 1 : vector<8x512xf32>, i32 -> vector<8x512xf32>
    %c1_41 = arith.constant 1 : index
    %c0_42 = arith.constant 0 : index
    %77 = vector.load %arg1[%c1_41, %c0_42] : memref<9x512xf32, #tpu.memory_space<vmem>>, vector<1x512xf32>
    %78 = vector.broadcast %77 : vector<1x512xf32> to vector<8x512xf32>
    %79 = arith.mulf %76, %78 : vector<8x512xf32>
    %c8_43 = arith.constant 8 : index
    %c0_44 = arith.constant 0 : index
    %80 = vector.load %arg10[%c8_43, %c0_44] : memref<72x512xf32, #tpu.memory_space<vmem>>, vector<8x512xf32>
    tpu.vector_store %arg10[%c8_43, %c0_44], %79 {strides = array<i32>} : memref<72x512xf32, #tpu.memory_space<vmem>>, vector<8x512xf32>,
    %c15_i32_45 = arith.constant 15 : i32
    %81 = tpu.dynamic_rotate %70 by %c15_i32_45 dim 1 : vector<8x512xf32>, i32 -> vector<8x512xf32>
    %c2_46 = arith.constant 2 : index
    %c0_47 = arith.constant 0 : index
    %82 = vector.load %arg1[%c2_46, %c0_47] : memref<9x512xf32, #tpu.memory_space<vmem>>, vector<1x512xf32>
    %83 = vector.broadcast %82 : vector<1x512xf32> to vector<8x512xf32>
    %84 = arith.mulf %81, %83 : vector<8x512xf32>
    %c16_48 = arith.constant 16 : index
    %c0_49 = arith.constant 0 : index
    %85 = vector.load %arg10[%c16_48, %c0_49] : memref<72x512xf32, #tpu.memory_space<vmem>>, vector<8x512xf32>
    tpu.vector_store %arg10[%c16_48, %c0_49], %84 {strides = array<i32>} : memref<72x512xf32, #tpu.memory_space<vmem>>, vector<8x512xf32>,
    %c1_i32_50 = arith.constant 1 : i32
    %86 = tpu.dynamic_rotate %70 by %c1_i32_50 dim 1 : vector<8x512xf32>, i32 -> vector<8x512xf32>
    %c3_51 = arith.constant 3 : index
    %c0_52 = arith.constant 0 : index
    %87 = vector.load %arg1[%c3_51, %c0_52] : memref<9x512xf32, #tpu.memory_space<vmem>>, vector<1x512xf32>
    %88 = vector.broadcast %87 : vector<1x512xf32> to vector<8x512xf32>
    %89 = arith.mulf %86, %88 : vector<8x512xf32>
    %c24_53 = arith.constant 24 : index
    %c0_54 = arith.constant 0 : index
    %90 = vector.load %arg10[%c24_53, %c0_54] : memref<72x512xf32, #tpu.memory_space<vmem>>, vector<8x512xf32>
    tpu.vector_store %arg10[%c24_53, %c0_54], %89 {strides = array<i32>} : memref<72x512xf32, #tpu.memory_space<vmem>>, vector<8x512xf32>,
    %c32_55 = arith.constant 32 : index
    %c0_56 = arith.constant 0 : index
    %91 = vector.load %arg10[%c32_55, %c0_56] : memref<72x512xf32, #tpu.memory_space<vmem>>, vector<8x512xf32>
    tpu.vector_store %arg10[%c32_55, %c0_56], %70 {strides = array<i32>} : memref<72x512xf32, #tpu.memory_space<vmem>>, vector<8x512xf32>,
    %c511_i32_57 = arith.constant 511 : i32
    %92 = tpu.dynamic_rotate %70 by %c511_i32_57 dim 1 : vector<8x512xf32>, i32 -> vector<8x512xf32>
    %c5_58 = arith.constant 5 : index
    %c0_59 = arith.constant 0 : index
    %93 = vector.load %arg1[%c5_58, %c0_59] : memref<9x512xf32, #tpu.memory_space<vmem>>, vector<1x512xf32>
    %94 = vector.broadcast %93 : vector<1x512xf32> to vector<8x512xf32>
    %95 = arith.mulf %92, %94 : vector<8x512xf32>
    %c40 = arith.constant 40 : index
    %c0_60 = arith.constant 0 : index
    %96 = vector.load %arg10[%c40, %c0_60] : memref<72x512xf32, #tpu.memory_space<vmem>>, vector<8x512xf32>
    tpu.vector_store %arg10[%c40, %c0_60], %95 {strides = array<i32>} : memref<72x512xf32, #tpu.memory_space<vmem>>, vector<8x512xf32>,
    %c497_i32_61 = arith.constant 497 : i32
    %97 = tpu.dynamic_rotate %70 by %c497_i32_61 dim 1 : vector<8x512xf32>, i32 -> vector<8x512xf32>
    %c6_62 = arith.constant 6 : index
    %c0_63 = arith.constant 0 : index
    %98 = vector.load %arg1[%c6_62, %c0_63] : memref<9x512xf32, #tpu.memory_space<vmem>>, vector<1x512xf32>
    %99 = vector.broadcast %98 : vector<1x512xf32> to vector<8x512xf32>
    %100 = arith.mulf %97, %99 : vector<8x512xf32>
    %c48 = arith.constant 48 : index
    %c0_64 = arith.constant 0 : index
    %101 = vector.load %arg10[%c48, %c0_64] : memref<72x512xf32, #tpu.memory_space<vmem>>, vector<8x512xf32>
    tpu.vector_store %arg10[%c48, %c0_64], %100 {strides = array<i32>} : memref<72x512xf32, #tpu.memory_space<vmem>>, vector<8x512xf32>,
    %c496_i32_65 = arith.constant 496 : i32
    %102 = tpu.dynamic_rotate %70 by %c496_i32_65 dim 1 : vector<8x512xf32>, i32 -> vector<8x512xf32>
    %c7_66 = arith.constant 7 : index
    %c0_67 = arith.constant 0 : index
    %103 = vector.load %arg1[%c7_66, %c0_67] : memref<9x512xf32, #tpu.memory_space<vmem>>, vector<1x512xf32>
    %104 = vector.broadcast %103 : vector<1x512xf32> to vector<8x512xf32>
    %105 = arith.mulf %102, %104 : vector<8x512xf32>
    %c56 = arith.constant 56 : index
    %c0_68 = arith.constant 0 : index
    %106 = vector.load %arg10[%c56, %c0_68] : memref<72x512xf32, #tpu.memory_space<vmem>>, vector<8x512xf32>
    tpu.vector_store %arg10[%c56, %c0_68], %105 {strides = array<i32>} : memref<72x512xf32, #tpu.memory_space<vmem>>, vector<8x512xf32>,
    %c495_i32_69 = arith.constant 495 : i32
    %107 = tpu.dynamic_rotate %70 by %c495_i32_69 dim 1 : vector<8x512xf32>, i32 -> vector<8x512xf32>
    %c8_70 = arith.constant 8 : index
    %c0_71 = arith.constant 0 : index
    %108 = vector.load %arg1[%c8_70, %c0_71] : memref<9x512xf32, #tpu.memory_space<vmem>>, vector<1x512xf32>
    %109 = vector.broadcast %108 : vector<1x512xf32> to vector<8x512xf32>
    %110 = arith.mulf %107, %109 : vector<8x512xf32>
    %c64 = arith.constant 64 : index
    %c0_72 = arith.constant 0 : index
    %111 = vector.load %arg10[%c64, %c0_72] : memref<72x512xf32, #tpu.memory_space<vmem>>, vector<8x512xf32>
    tpu.vector_store %arg10[%c64, %c0_72], %110 {strides = array<i32>} : memref<72x512xf32, #tpu.memory_space<vmem>>, vector<8x512xf32>,
    %c0_73 = arith.constant 0 : index
    %c0_74 = arith.constant 0 : index
    %112 = vector.load %arg3[%c0_73, %c0_74] : memref<4x72xf32, #tpu.memory_space<vmem>>, vector<4x72xf32>
    %c0_75 = arith.constant 0 : index
    %c0_76 = arith.constant 0 : index
    %113 = vector.load %arg10[%c0_75, %c0_76] : memref<72x512xf32, #tpu.memory_space<vmem>>, vector<72x512xf32>
    %cst_77 = arith.constant dense<0.000000e+00> : vector<4x512xf32>
    %114 = tpu.matmul %112, %113, %cst_77 {dimension_numbers = #tpu.dot_dimension_numbers<[1], [0], [0], [1], [0, 0, 1, 1], [], []>} : vector<4x72xf32>, vector<72x512xf32>, vector<4x512xf32> -> vector<4x512xf32>
    %c0_78 = arith.constant 0 : index
    %c0_79 = arith.constant 0 : index
    %115 = vector.load %arg6[%c0_78, %c0_79] : memref<4x1xf32, #tpu.memory_space<vmem>>, vector<4x1xf32>
    %c0_80 = arith.constant 0 : index
    %c0_81 = arith.constant 0 : index
    %116 = vector.load %arg7[%c0_80, %c0_81] : memref<4x1xf32, #tpu.memory_space<vmem>>, vector<4x1xf32>
    %cst_82 = arith.constant dense<0.000000e+00> : vector<4xf32>
    %117 = vector.multi_reduction <add>, %114, %cst_82 [1] : vector<4x512xf32> to vector<4xf32>
    %118 = vector.shape_cast %117 : vector<4xf32> to vector<4x1xf32>
    %119 = arith.mulf %114, %114 : vector<4x512xf32>
    %cst_83 = arith.constant dense<0.000000e+00> : vector<4xf32>
    %120 = vector.multi_reduction <add>, %119, %cst_83 [1] : vector<4x512xf32> to vector<4xf32>
    %121 = vector.shape_cast %120 : vector<4xf32> to vector<4x1xf32>
    %cst_84 = arith.constant 0.001953125 : f32
    %122 = vector.broadcast %cst_84 : f32 to vector<4x1xf32>
    %123 = arith.mulf %118, %122 : vector<4x1xf32>
    %cst_85 = arith.constant 0.001953125 : f32
    %124 = vector.broadcast %cst_85 : f32 to vector<4x1xf32>
    %125 = arith.mulf %121, %124 : vector<4x1xf32>
    %126 = arith.mulf %123, %123 : vector<4x1xf32>
    %127 = arith.subf %125, %126 : vector<4x1xf32>
    %128 = vector.broadcast %123 : vector<4x1xf32> to vector<4x512xf32>
    %129 = arith.subf %114, %128 : vector<4x512xf32>
    %cst_86 = arith.constant 9.99999974E-6 : f32
    %130 = vector.broadcast %cst_86 : f32 to vector<4x1xf32>
    %131 = arith.addf %127, %130 : vector<4x1xf32>
    %132 = math.rsqrt %131 : vector<4x1xf32>
    %133 = vector.broadcast %132 : vector<4x1xf32> to vector<4x512xf32>
    %134 = arith.mulf %129, %133 : vector<4x512xf32>
    %135 = vector.broadcast %115 : vector<4x1xf32> to vector<4x512xf32>
    %136 = arith.mulf %134, %135 : vector<4x512xf32>
    %137 = vector.broadcast %116 : vector<4x1xf32> to vector<4x512xf32>
    %138 = arith.addf %136, %137 : vector<4x512xf32>
    %139 = arith.addf %138, %0 : vector<4x512xf32>
    %cst_87 = arith.constant 0.000000e+00 : f32
    %140 = vector.broadcast %cst_87 : f32 to vector<4x512xf32>
    %141 = arith.maximumf %139, %140 : vector<4x512xf32>
    %c0_88 = arith.constant 0 : index
    %c0_89 = arith.constant 0 : index
    %142 = vector.load %arg8[%c0_88, %c0_89] : memref<4x512xf32, #tpu.memory_space<vmem>>, vector<4x512xf32>
    tpu.vector_store %arg8[%c0_88, %c0_89], %141 {strides = array<i32>} : memref<4x512xf32, #tpu.memory_space<vmem>>, vector<4x512xf32>,
    return
  }
}

</mosaic_0001>

<llo_original>
// kernel: tpu_custom_call.1
$region0: #{tpu_custom_call.1}
  #allocation0 [shape = 'u32[]', space=smem, size = 0x4, offset = 0x4, fixed_abs, tag = 'smem constant byte address 0x4 - core index']
  #allocation1 [shape = 'u32[144,128]{1,0:T(1,128)}', space=vmem, size = 0x12000, scoped, tag = 'internal scratch']
  #allocation2 [shape = 'f32[36,512]{1,0:T(8,128)}', space=vmem, size = 0x14000, scoped, tag = 'scratch operand']
  #allocation3 [shape = 'f32[72,512]{1,0:T(8,128)}', space=vmem, size = 0x24000, scoped, tag = 'scratch operand']
  %s0 = inlined_call_operand.vmem [shape: f32[4,512], index: 0, kind: input, shape index: {}]
  %s1 = inlined_call_operand.hbm [shape: f32[9,512], index: 1, kind: input, shape index: {}]
  %s2 = inlined_call_operand.vmem [shape: f32[8,36], index: 2, kind: input, shape index: {}]
  %s3 = inlined_call_operand.vmem [shape: f32[4,72], index: 3, kind: input, shape index: {}]
  %s4 = inlined_call_operand.vmem [shape: f32[8,1], index: 4, kind: input, shape index: {}]
  %s5 = inlined_call_operand.vmem [shape: f32[8,1], index: 5, kind: input, shape index: {}]
  %s6 = inlined_call_operand.vmem [shape: f32[4,1], index: 6, kind: input, shape index: {}]
  %s7 = inlined_call_operand.vmem [shape: f32[4,1], index: 7, kind: input, shape index: {}]
  %s8 = inlined_call_operand.hbm [shape: f32[4,512], index: 8, kind: output, shape index: {}]
  %s9 = sld [smem:[#allocation0]]
  $region46: #{tpu_custom_call.1} parent=0
    _
  %s11 = ssub.s32 1, %s9
  %s12 = scalar_select 0, %s11, %s9
  $region1: #{tpu_custom_call.1} parent=0
    #allocation4 [shape = 'u8[32768]{0}', space=vmem, size = 0x8000, scoped, tag = 'input window, operand 1, single buffered']
    #allocation5 [shape = 's32[1]{0}', space=sflag, size = 0x4, scoped, tag = 'scoped memory for tpu_custom_call.1']
    #allocation6 [shape = 's32[1]{0}', space=sflag, size = 0x4, scoped, tag = 'scoped memory for tpu_custom_call.1']
    #allocation7 [shape = 'u8[8192]{0}', space=vmem, size = 0x2000, scoped, tag = 'output window, operand 0, single buffered']
    %13 = vsyncpa [#allocation5], 0
    %14 = vsyncpa [#allocation6], 0
    // Predicated region
    $region2: #{tpu_custom_call.1} parent=1 // pred_check
      _
    $region3: #{tpu_custom_call.1} parent=1 // pred_check_branch
      %16 = sbr.rel (0) target = $region5
    $region4: #{tpu_custom_call.1} parent=1 // pred_region
      _
    $region5: #{tpu_custom_call.1} parent=1 // pred_fallthru
      _
    // Predicated region
    $region6: #{tpu_custom_call.1} parent=1 // pred_check
      _
    $region7: #{tpu_custom_call.1} parent=1 // pred_check_branch
      %18 = sbr.rel (0) target = $region9
    $region8: #{tpu_custom_call.1} parent=1 // pred_region
      %s20 = ssub.s32 1024, 1024
      %21 = vsyncadd [#allocation5], %s20
      %s22 = sshll.u32 [#allocation4], 4
      %s23 = int_to_ptr.vmem [resolvable:$true] %s22
      %28 = dma.hbm_to_vmem [thread:$0]  %s1, 1024, %s23, [#allocation5], 512, 512, 32
    $region9: #{tpu_custom_call.1} parent=1 // pred_fallthru
      _
    // Predicated region
    $region10: #{tpu_custom_call.1} parent=1 // pred_check
      _
    $region11: #{tpu_custom_call.1} parent=1 // pred_check_branch
      %30 = sbr.rel (0) target = $region13
    $region12: #{tpu_custom_call.1} parent=1 // pred_region
      _
    $region13: #{tpu_custom_call.1} parent=1 // pred_fallthru
      _
    // Predicated region
    $region14: #{tpu_custom_call.1} parent=1 // pred_check
      _
    $region15: #{tpu_custom_call.1} parent=1 // pred_check_branch
      %32 = sbr.rel (0) target = $region17
    $region16: #{tpu_custom_call.1} parent=1 // pred_region
      _
    $region17: #{tpu_custom_call.1} parent=1 // pred_fallthru
      _
    // Predicated region
    $region18: #{tpu_custom_call.1} parent=1 // pred_check
      _
    $region19: #{tpu_custom_call.1} parent=1 // pred_check_branch
      %34 = sbr.rel (0) target = $region21
    $region20: #{tpu_custom_call.1} parent=1 // pred_region
      _
    $region21: #{tpu_custom_call.1} parent=1 // pred_fallthru
      _
    // Predicated region
    $region22: #{tpu_custom_call.1} parent=1 // pred_check
      _
    $region23: #{tpu_custom_call.1} parent=1 // pred_check_branch
      %36 = sbr.rel (0) target = $region25
    $region24: #{tpu_custom_call.1} parent=1 // pred_region
      _
    $region25: #{tpu_custom_call.1} parent=1 // pred_fallthru
      _
    // Predicated region
    $region26: #{tpu_custom_call.1} parent=1 // pred_check
      _
    $region27: #{tpu_custom_call.1} parent=1 // pred_check_branch
      %38 = sbr.rel (0) target = $region29
    $region28: #{tpu_custom_call.1} parent=1 // pred_region
      _
    $region29: #{tpu_custom_call.1} parent=1 // pred_fallthru
      _
    // Predicated region
    $region30: #{tpu_custom_call.1} parent=1 // pred_check
      _
    $region31: #{tpu_custom_call.1} parent=1 // pred_check_branch
      %40 = sbr.rel (0) target = $region33
    $region32: #{tpu_custom_call.1} parent=1 // pred_region
      _
    $region33: #{tpu_custom_call.1} parent=1 // pred_fallthru
      _
    // Predicated region
    $region34: #{tpu_custom_call.1} parent=1 // pred_check
      _
    $region35: #{tpu_custom_call.1} parent=1 // pred_check_branch
      %42 = sbr.rel (0) target = $region37
    $region36: #{tpu_custom_call.1} parent=1 // pred_region
      %43 = dma.done [#allocation5], 1024
    $region37: #{tpu_custom_call.1} parent=1 // pred_fallthru
      _
    %v44 = vld [vmem:[%s0] sm:$0xff]
    %v45 = vld [vmem:[%s0 + $0x8] sm:$0xff]
    %v48 = vcombine.high %v44, %v44
    %v49 = vcombine.high %v45, %v45
    %52 = vrot.lane.b32.xlu0 %v44, 17
    %v53 = vpop.permute.xlu0 %52
    %54 = vrot.lane.b32.xlu0 %v48, 17
    %v55 = vpop.permute.xlu0 %54
    %56 = vrot.lane.b32.xlu0 %v45, 17
    %v57 = vpop.permute.xlu0 %56
    %58 = vrot.lane.b32.xlu0 %v49, 17
    %v59 = vpop.permute.xlu0 %58
    %v60 = vlaneseq
    %v61 = vand.u32 %v60, 127
    %vm62 = vcmp.lt.s32.totalorder %v61, 17
    %v63 = vsel %vm62, %v57, %v59
    %v64 = vsel %vm62, %v55, %v57
    %v65 = vsel %vm62, %v53, %v55
    %v66 = vsel %vm62, %v59, %v53
    %v67 = vld [vmem:[#allocation4] ss:$8 sm:$0xf]
    %v69 = vlaneseq
    %v70 = vshrl.u32 %v69, 7
    %v71 = vsub.s32 0, %v70
    %v72 = vrot.slane %v67, %v71
    %v73 = vlaneseq
    %v74 = vshrl.u32 %v73, 7
    %v75 = vsub.s32 1, %v74
    %v76 = vrot.slane %v67, %v75
    %v77 = vlaneseq
    %v78 = vshrl.u32 %v77, 7
    %v79 = vsub.s32 2, %v78
    %v80 = vrot.slane %v67, %v79
    %v81 = vlaneseq
    %v82 = vshrl.u32 %v81, 7
    %v83 = vsub.s32 3, %v82
    %v84 = vrot.slane %v67, %v83
    %v89 = vmul.f32 %v66, %v72
    %v90 = vmul.f32 %v65, %v76
    %v91 = vmul.f32 %v64, %v80
    %v92 = vmul.f32 %v63, %v84
    %93 = vst [vmem:[#allocation2] sm:$0xf] %v89
    %94 = vst [vmem:[#allocation2 + $0x8] sm:$0xf] %v90
    %95 = vst [vmem:[#allocation2 + $0x10] sm:$0xf] %v91
    %96 = vst [vmem:[#allocation2 + $0x18] sm:$0xf] %v92
    %97 = vrot.lane.b32.xlu0 %v44, 16
    %v98 = vpop.permute.xlu0 %97
    %99 = vrot.lane.b32.xlu0 %v48, 16
    %v100 = vpop.permute.xlu0 %99
    %101 = vrot.lane.b32.xlu0 %v45, 16
    %v102 = vpop.permute.xlu0 %101
    %103 = vrot.lane.b32.xlu0 %v49, 16
    %v104 = vpop.permute.xlu0 %103
    %vm105 = vcmp.lt.s32.totalorder %v61, 16
    %v106 = vsel %vm105, %v102, %v104
    %v107 = vsel %vm105, %v100, %v102
    %v108 = vsel %vm105, %v98, %v100
    %v109 = vsel %vm105, %v104, %v98
    %s110 = scalar_lea.vmem [#allocation4], 1
    %v111 = vld [vmem:[%s110] ss:$8 sm:$0xf]
    %v113 = vlaneseq
    %v114 = vshrl.u32 %v113, 7
    %v115 = vsub.s32 0, %v114
    %v116 = vrot.slane %v111, %v115
    %v117 = vlaneseq
    %v118 = vshrl.u32 %v117, 7
    %v119 = vsub.s32 1, %v118
    %v120 = vrot.slane %v111, %v119
    %v121 = vlaneseq
    %v122 = vshrl.u32 %v121, 7
    %v123 = vsub.s32 2, %v122
    %v124 = vrot.slane %v111, %v123
    %v125 = vlaneseq
    %v126 = vshrl.u32 %v125, 7
    %v127 = vsub.s32 3, %v126
    %v128 = vrot.slane %v111, %v127
    %v133 = vmul.f32 %v109, %v116
    %v134 = vmul.f32 %v108, %v120
    %v135 = vmul.f32 %v107, %v124
    %v136 = vmul.f32 %v106, %v128
    %v141 = vrot.slane %v133, 4
    %v142 = vrot.slane %v134, 4
    %v143 = vrot.slane %v135, 4
    %v144 = vrot.slane %v136, 4
    %149 = vst [vmem:[#allocation2] sm:$0xf0] %v141
    %150 = vst [vmem:[#allocation2 + $0x8] sm:$0xf0] %v142
    %151 = vst [vmem:[#allocation2 + $0x10] sm:$0xf0] %v143
    %152 = vst [vmem:[#allocation2 + $0x18] sm:$0xf0] %v144
    %153 = vrot.lane.b32.xlu0 %v44, 15
    %v154 = vpop.permute.xlu0 %153
    %155 = vrot.lane.b32.xlu0 %v48, 15
    %v156 = vpop.permute.xlu0 %155
    %157 = vrot.lane.b32.xlu0 %v45, 15
    %v158 = vpop.permute.xlu0 %157
    %159 = vrot.lane.b32.xlu0 %v49, 15
    %v160 = vpop.permute.xlu0 %159
    %vm161 = vcmp.lt.s32.totalorder %v61, 15
    %v162 = vsel %vm161, %v158, %v160
    %v163 = vsel %vm161, %v156, %v158
    %v164 = vsel %vm161, %v154, %v156
    %v165 = vsel %vm161, %v160, %v154
    %s166 = scalar_lea.vmem [#allocation4], 2
    %v167 = vld [vmem:[%s166] ss:$8 sm:$0xf]
    %v169 = vlaneseq
    %v170 = vshrl.u32 %v169, 7
    %v171 = vsub.s32 0, %v170
    %v172 = vrot.slane %v167, %v171
    %v173 = vlaneseq
    %v174 = vshrl.u32 %v173, 7
    %v175 = vsub.s32 1, %v174
    %v176 = vrot.slane %v167, %v175
    %v177 = vlaneseq
    %v178 = vshrl.u32 %v177, 7
    %v179 = vsub.s32 2, %v178
    %v180 = vrot.slane %v167, %v179
    %v181 = vlaneseq
    %v182 = vshrl.u32 %v181, 7
    %v183 = vsub.s32 3, %v182
    %v184 = vrot.slane %v167, %v183
    %v189 = vmul.f32 %v165, %v172
    %v190 = vmul.f32 %v164, %v176
    %v191 = vmul.f32 %v163, %v180
    %v192 = vmul.f32 %v162, %v184
    %193 = vst [vmem:[#allocation2 + $0x20] sm:$0xf] %v189
    %194 = vst [vmem:[#allocation2 + $0x28] sm:$0xf] %v190
    %195 = vst [vmem:[#allocation2 + $0x30] sm:$0xf] %v191
    %196 = vst [vmem:[#allocation2 + $0x38] sm:$0xf] %v192
    %197 = vrot.lane.b32.xlu0 %v44, 1
    %v198 = vpop.permute.xlu0 %197
    %199 = vrot.lane.b32.xlu0 %v48, 1
    %v200 = vpop.permute.xlu0 %199
    %201 = vrot.lane.b32.xlu0 %v45, 1
    %v202 = vpop.permute.xlu0 %201
    %203 = vrot.lane.b32.xlu0 %v49, 1
    %v204 = vpop.permute.xlu0 %203
    %vm205 = vcmp.lt.s32.totalorder %v61, 1
    %v206 = vsel %vm205, %v202, %v204
    %v207 = vsel %vm205, %v200, %v202
    %v208 = vsel %vm205, %v198, %v200
    %v209 = vsel %vm205, %v204, %v198
    %s210 = scalar_lea.vmem [#allocation4], 3
    %v211 = vld [vmem:[%s210] ss:$8 sm:$0xf]
    %v213 = vlaneseq
    %v214 = vshrl.u32 %v213, 7
    %v215 = vsub.s32 0, %v214
    %v216 = vrot.slane %v211, %v215
    %v217 = vlaneseq
    %v218 = vshrl.u32 %v217, 7
    %v219 = vsub.s32 1, %v218
    %v220 = vrot.slane %v211, %v219
    %v221 = vlaneseq
    %v222 = vshrl.u32 %v221, 7
    %v223 = vsub.s32 2, %v222
    %v224 = vrot.slane %v211, %v223
    %v225 = vlaneseq
    %v226 = vshrl.u32 %v225, 7
    %v227 = vsub.s32 3, %v226
    %v228 = vrot.slane %v211, %v227
    %v233 = vmul.f32 %v209, %v216
    %v234 = vmul.f32 %v208, %v220
    %v235 = vmul.f32 %v207, %v224
    %v236 = vmul.f32 %v206, %v228
    %v241 = vrot.slane %v233, 4
    %v242 = vrot.slane %v234, 4
    %v243 = vrot.slane %v235, 4
    %v244 = vrot.slane %v236, 4
    %249 = vst [vmem:[#allocation2 + $0x20] sm:$0xf0] %v241
    %250 = vst [vmem:[#allocation2 + $0x28] sm:$0xf0] %v242
    %251 = vst [vmem:[#allocation2 + $0x30] sm:$0xf0] %v243
    %252 = vst [vmem:[#allocation2 + $0x38] sm:$0xf0] %v244
    %253 = vst [vmem:[#allocation2 + $0x40] sm:$0xf] %v44
    %254 = vst [vmem:[#allocation2 + $0x48] sm:$0xf] %v48
    %255 = vst [vmem:[#allocation2 + $0x50] sm:$0xf] %v45
    %256 = vst [vmem:[#allocation2 + $0x58] sm:$0xf] %v49
    %257 = vrot.lane.b32.xlu0 %v44, 127
    %v258 = vpop.permute.xlu0 %257
    %259 = vrot.lane.b32.xlu0 %v48, 127
    %v260 = vpop.permute.xlu0 %259
    %261 = vrot.lane.b32.xlu0 %v45, 127
    %v262 = vpop.permute.xlu0 %261
    %263 = vrot.lane.b32.xlu0 %v49, 127
    %v264 = vpop.permute.xlu0 %263
    %vm265 = vcmp.lt.s32.totalorder %v61, 127
    %v266 = vsel %vm265, %v262, %v264
    %v267 = vsel %vm265, %v260, %v262
    %v268 = vsel %vm265, %v258, %v260
    %v269 = vsel %vm265, %v264, %v258
    %s270 = scalar_lea.vmem [#allocation4], 5
    %v271 = vld [vmem:[%s270] ss:$8 sm:$0xf]
    %v273 = vlaneseq
    %v274 = vshrl.u32 %v273, 7
    %v275 = vsub.s32 0, %v274
    %v276 = vrot.slane %v271, %v275
    %v277 = vlaneseq
    %v278 = vshrl.u32 %v277, 7
    %v279 = vsub.s32 1, %v278
    %v280 = vrot.slane %v271, %v279
    %v281 = vlaneseq
    %v282 = vshrl.u32 %v281, 7
    %v283 = vsub.s32 2, %v282
    %v284 = vrot.slane %v271, %v283
    %v285 = vlaneseq
    %v286 = vshrl.u32 %v285, 7
    %v287 = vsub.s32 3, %v286
    %v288 = vrot.slane %v271, %v287
    %v293 = vmul.f32 %v268, %v276
    %v294 = vmul.f32 %v267, %v280
    %v295 = vmul.f32 %v266, %v284
    %v296 = vmul.f32 %v269, %v288
    %v301 = vrot.slane %v293, 4
    %v302 = vrot.slane %v294, 4
    %v303 = vrot.slane %v295, 4
    %v304 = vrot.slane %v296, 4
    %309 = vst [vmem:[#allocation2 + $0x40] sm:$0xf0] %v301
    %310 = vst [vmem:[#allocation2 + $0x48] sm:$0xf0] %v302
    %311 = vst [vmem:[#allocation2 + $0x50] sm:$0xf0] %v303
    %312 = vst [vmem:[#allocation2 + $0x58] sm:$0xf0] %v304
    %313 = vrot.lane.b32.xlu0 %v44, 113
    %v314 = vpop.permute.xlu0 %313
    %315 = vrot.lane.b32.xlu0 %v48, 113
    %v316 = vpop.permute.xlu0 %315
    %317 = vrot.lane.b32.xlu0 %v45, 113
    %v318 = vpop.permute.xlu0 %317
    %319 = vrot.lane.b32.xlu0 %v49, 113
    %v320 = vpop.permute.xlu0 %319
    %vm321 = vcmp.lt.s32.totalorder %v61, 113
    %v322 = vsel %vm321, %v318, %v320
    %v323 = vsel %vm321, %v316, %v318
    %v324 = vsel %vm321, %v314, %v316
    %v325 = vsel %vm321, %v320, %v314
    %s326 = scalar_lea.vmem [#allocation4], 6
    %v327 = vld [vmem:[%s326] ss:$8 sm:$0xf]
    %v329 = vlaneseq
    %v330 = vshrl.u32 %v329, 7
    %v331 = vsub.s32 0, %v330
    %v332 = vrot.slane %v327, %v331
    %v333 = vlaneseq
    %v334 = vshrl.u32 %v333, 7
    %v335 = vsub.s32 1, %v334
    %v336 = vrot.slane %v327, %v335
    %v337 = vlaneseq
    %v338 = vshrl.u32 %v337, 7
    %v339 = vsub.s32 2, %v338
    %v340 = vrot.slane %v327, %v339
    %v341 = vlaneseq
    %v342 = vshrl.u32 %v341, 7
    %v343 = vsub.s32 3, %v342
    %v344 = vrot.slane %v327, %v343
    %v349 = vmul.f32 %v324, %v332
    %v350 = vmul.f32 %v323, %v336
    %v351 = vmul.f32 %v322, %v340
    %v352 = vmul.f32 %v325, %v344
    %353 = vst [vmem:[#allocation2 + $0x60] sm:$0xf] %v349
    %354 = vst [vmem:[#allocation2 + $0x68] sm:$0xf] %v350
    %355 = vst [vmem:[#allocation2 + $0x70] sm:$0xf] %v351
    %356 = vst [vmem:[#allocation2 + $0x78] sm:$0xf] %v352
    %357 = vrot.lane.b32.xlu0 %v44, 112
    %v358 = vpop.permute.xlu0 %357
    %359 = vrot.lane.b32.xlu0 %v48, 112
    %v360 = vpop.permute.xlu0 %359
    %361 = vrot.lane.b32.xlu0 %v45, 112
    %v362 = vpop.permute.xlu0 %361
    %363 = vrot.lane.b32.xlu0 %v49, 112
    %v364 = vpop.permute.xlu0 %363
    %vm365 = vcmp.lt.s32.totalorder %v61, 112
    %v366 = vsel %vm365, %v362, %v364
    %v367 = vsel %vm365, %v360, %v362
    %v368 = vsel %vm365, %v358, %v360
    %v369 = vsel %vm365, %v364, %v358
    %s370 = scalar_lea.vmem [#allocation4], 7
    %v371 = vld [vmem:[%s370] ss:$8 sm:$0xf]
    %v373 = vlaneseq
    %v374 = vshrl.u32 %v373, 7
    %v375 = vsub.s32 0, %v374
    %v376 = vrot.slane %v371, %v375
    %v377 = vlaneseq
    %v378 = vshrl.u32 %v377, 7
    %v379 = vsub.s32 1, %v378
    %v380 = vrot.slane %v371, %v379
    %v381 = vlaneseq
    %v382 = vshrl.u32 %v381, 7
    %v383 = vsub.s32 2, %v382
    %v384 = vrot.slane %v371, %v383
    %v385 = vlaneseq
    %v386 = vshrl.u32 %v385, 7
    %v387 = vsub.s32 3, %v386
    %v388 = vrot.slane %v371, %v387
    %v393 = vmul.f32 %v368, %v376
    %v394 = vmul.f32 %v367, %v380
    %v395 = vmul.f32 %v366, %v384
    %v396 = vmul.f32 %v369, %v388
    %v401 = vrot.slane %v393, 4
    %v402 = vrot.slane %v394, 4
    %v403 = vrot.slane %v395, 4
    %v404 = vrot.slane %v396, 4
    %409 = vst [vmem:[#allocation2 + $0x60] sm:$0xf0] %v401
    %410 = vst [vmem:[#allocation2 + $0x68] sm:$0xf0] %v402
    %411 = vst [vmem:[#allocation2 + $0x70] sm:$0xf0] %v403
    %412 = vst [vmem:[#allocation2 + $0x78] sm:$0xf0] %v404
    %413 = vrot.lane.b32.xlu0 %v44, 111
    %v414 = vpop.permute.xlu0 %413
    %415 = vrot.lane.b32.xlu0 %v48, 111
    %v416 = vpop.permute.xlu0 %415
    %417 = vrot.lane.b32.xlu0 %v45, 111
    %v418 = vpop.permute.xlu0 %417
    %419 = vrot.lane.b32.xlu0 %v49, 111
    %v420 = vpop.permute.xlu0 %419
    %vm421 = vcmp.lt.s32.totalorder %v61, 111
    %v422 = vsel %vm421, %v418, %v420
    %v423 = vsel %vm421, %v416, %v418
    %v424 = vsel %vm421, %v414, %v416
    %v425 = vsel %vm421, %v420, %v414
    %s426 = scalar_lea.vmem [#allocation4], 32
    %v427 = vld [vmem:[%s426] ss:$8 sm:$0xf]
    %v429 = vlaneseq
    %v430 = vshrl.u32 %v429, 7
    %v431 = vsub.s32 0, %v430
    %v432 = vrot.slane %v427, %v431
    %v433 = vlaneseq
    %v434 = vshrl.u32 %v433, 7
    %v435 = vsub.s32 1, %v434
    %v436 = vrot.slane %v427, %v435
    %v437 = vlaneseq
    %v438 = vshrl.u32 %v437, 7
    %v439 = vsub.s32 2, %v438
    %v440 = vrot.slane %v427, %v439
    %v441 = vlaneseq
    %v442 = vshrl.u32 %v441, 7
    %v443 = vsub.s32 3, %v442
    %v444 = vrot.slane %v427, %v443
    %v449 = vmul.f32 %v424, %v432
    %v450 = vmul.f32 %v423, %v436
    %v451 = vmul.f32 %v422, %v440
    %v452 = vmul.f32 %v425, %v444
    %453 = vst [vmem:[#allocation2 + $0x80] sm:$0xf] %v449
    %454 = vst [vmem:[#allocation2 + $0x88] sm:$0xf] %v450
    %455 = vst [vmem:[#allocation2 + $0x90] sm:$0xf] %v451
    %456 = vst [vmem:[#allocation2 + $0x98] sm:$0xf] %v452
    %v457 = vld [vmem:[%s2] sm:$0xff]
    %v458 = vld [vmem:[#allocation2] sm:$0xff]
    %v459 = vld [vmem:[#allocation2 + $0x8] sm:$0xff]
    %v460 = vld [vmem:[#allocation2 + $0x10] sm:$0xff]
    %v461 = vld [vmem:[#allocation2 + $0x18] sm:$0xff]
    %v462 = vld [vmem:[#allocation2 + $0x20] sm:$0xff]
    %v463 = vld [vmem:[#allocation2 + $0x28] sm:$0xff]
    %v464 = vld [vmem:[#allocation2 + $0x30] sm:$0xff]
    %v465 = vld [vmem:[#allocation2 + $0x38] sm:$0xff]
    %v466 = vld [vmem:[#allocation2 + $0x40] sm:$0xff]
    %v467 = vld [vmem:[#allocation2 + $0x48] sm:$0xff]
    %v468 = vld [vmem:[#allocation2 + $0x50] sm:$0xff]
    %v469 = vld [vmem:[#allocation2 + $0x58] sm:$0xff]
    %v470 = vld [vmem:[#allocation2 + $0x60] sm:$0xff]
    %v471 = vld [vmem:[#allocation2 + $0x68] sm:$0xff]
    %v472 = vld [vmem:[#allocation2 + $0x70] sm:$0xff]
    %v473 = vld [vmem:[#allocation2 + $0x78] sm:$0xff]
    %v474 = vld [vmem:[#allocation2 + $0x80] sm:$0xf]
    %v475 = vld [vmem:[#allocation2 + $0x88] sm:$0xf]
    %v476 = vld [vmem:[#allocation2 + $0x90] sm:$0xf]
    %v477 = vld [vmem:[#allocation2 + $0x98] sm:$0xf]
    %vm478 = vcmask 293888
    %v480 = vsel %vm478, %v457, 0
    %vm482 = vcmask 1043456
    %v484 = vsel %vm482, %v474, 0
    %v487 = vsel %vm482, %v475, 0
    %v490 = vsel %vm482, %v476, 0
    %v493 = vsel %vm482, %v477, 0
    %495 = vmatprep.subr.mxu0 0.0
    %496 = vmatpush1.msra.mxu0 0.0
    %497 = vmatprep.subr.mxu0 0.0
    %498 = vmatpush1.msra.mxu0 0.0
    %499 = vmatprep.subr.mxu0 0.0
    %500 = vmatpush1.msra.mxu0 0.0
    %501 = vmatprep.subr.mxu0 0.0
    %502 = vmatpush1.msra.mxu0 0.0
    %503 = vmatprep.subr.mxu0 0.0
    %504 = vmatpush1.msra.mxu0 0.0
    %505 = vmatprep.subr.mxu0 0.0
    %506 = vmatpush1.msra.mxu0 0.0
    %507 = vmatprep.subr.mxu0 0.0
    %508 = vmatpush1.msra.mxu0 0.0
    %509 = vmatprep.subr.mxu0 0.0
    %510 = vmatpush1.msra.mxu0 0.0
    %511 = vmatprep.subr.mxu0 0.0
    %512 = vmatpush1.msra.mxu0 0.0
    %513 = vmatprep.subr.mxu0 0.0
    %514 = vmatpush1.msra.mxu0 0.0
    %515 = vmatprep.subr.mxu0 0.0
    %516 = vmatpush1.msra.mxu0 0.0
    %517 = vmatprep.subr.mxu0 %v487
    %518 = vmatpush1.msra.mxu0 %v484
    %519 = vmatprep.subr.mxu0 %v471
    %520 = vmatpush1.msra.mxu0 %v470
    %521 = vmatprep.subr.mxu0 %v467
    %522 = vmatpush1.msra.mxu0 %v466
    %523 = vmatprep.subr.mxu0 %v463
    %524 = vmatpush1.msra.mxu0 %v462
    %525 = vmatprep.subr.mxu0 %v459
    %526 = vmatpush1.msra.mxu0 %v458
    %527 = vmatprep.subr.mxu0 0.0
    %528 = vmatpush2.msra.mxu0 0.0
    %529 = vmatprep.subr.mxu0 0.0
    %530 = vmatpush2.msra.mxu0 0.0
    %531 = vmatprep.subr.mxu0 0.0
    %532 = vmatpush2.msra.mxu0 0.0
    %533 = vmatprep.subr.mxu0 0.0
    %534 = vmatpush2.msra.mxu0 0.0
    %535 = vmatprep.subr.mxu0 0.0
    %536 = vmatpush2.msra.mxu0 0.0
    %537 = vmatprep.subr.mxu0 0.0
    %538 = vmatpush2.msra.mxu0 0.0
    %539 = vmatprep.subr.mxu0 0.0
    %540 = vmatpush2.msra.mxu0 0.0
    %541 = vmatprep.subr.mxu0 0.0
    %542 = vmatpush2.msra.mxu0 0.0
    %543 = vmatprep.subr.mxu0 0.0
    %544 = vmatpush2.msra.mxu0 0.0
    %545 = vmatprep.subr.mxu0 0.0
    %546 = vmatpush2.msra.mxu0 0.0
    %547 = vmatprep.subr.mxu0 0.0
    %548 = vmatpush2.msra.mxu0 0.0
    %549 = vmatprep.subr.mxu0 0.0
    %550 = vmatpush2.msra.mxu0 0.0
    %551 = vmatprep.subr.mxu0 0.0
    %552 = vmatpush2.msra.mxu0 0.0
    %553 = vmatprep.subr.mxu0 0.0
    %554 = vmatpush2.msra.mxu0 0.0
    %555 = vmatprep.subr.mxu0 0.0
    %556 = vmatpush2.msra.mxu0 0.0
    %557 = vmatprep.subr.mxu0 0.0
    %558 = vmatpush2.msra.mxu0 0.0
    %559 = vmatprep.mubr.f32.mxu0 0.0
    %560 = vmatmul.mubr.f32.gmra.mxu0 %v480
    %v561 = vpop.f32.mrf.mxu0
    %v562 = vadd.f32 0.0, %v561
    %v563 = vpop.f32.mrf.mxu0
    %v564 = vadd.f32 0.0, %v563
    %565 = vdwg.mxu0
    %566 = vmatprep.subr.mxu0 0.0
    %567 = vmatpush1.msra.mxu0 0.0
    %568 = vmatprep.subr.mxu0 0.0
    %569 = vmatpush1.msra.mxu0 0.0
    %570 = vmatprep.subr.mxu0 0.0
    %571 = vmatpush1.msra.mxu0 0.0
    %572 = vmatprep.subr.mxu0 0.0
    %573 = vmatpush1.msra.mxu0 0.0
    %574 = vmatprep.subr.mxu0 0.0
    %575 = vmatpush1.msra.mxu0 0.0
    %576 = vmatprep.subr.mxu0 0.0
    %577 = vmatpush1.msra.mxu0 0.0
    %578 = vmatprep.subr.mxu0 0.0
    %579 = vmatpush1.msra.mxu0 0.0
    %580 = vmatprep.subr.mxu0 0.0
    %581 = vmatpush1.msra.mxu0 0.0
    %582 = vmatprep.subr.mxu0 0.0
    %583 = vmatpush1.msra.mxu0 0.0
    %584 = vmatprep.subr.mxu0 0.0
    %585 = vmatpush1.msra.mxu0 0.0
    %586 = vmatprep.subr.mxu0 0.0
    %587 = vmatpush1.msra.mxu0 0.0
    %588 = vmatprep.subr.mxu0 %v493
    %589 = vmatpush1.msra.mxu0 %v490
    %590 = vmatprep.subr.mxu0 %v473
    %591 = vmatpush1.msra.mxu0 %v472
    %592 = vmatprep.subr.mxu0 %v469
    %593 = vmatpush1.msra.mxu0 %v468
    %594 = vmatprep.subr.mxu0 %v465
    %595 = vmatpush1.msra.mxu0 %v464
    %596 = vmatprep.subr.mxu0 %v461
    %597 = vmatpush1.msra.mxu0 %v460
    %598 = vmatprep.subr.mxu0 0.0
    %599 = vmatpush2.msra.mxu0 0.0
    %600 = vmatprep.subr.mxu0 0.0
    %601 = vmatpush2.msra.mxu0 0.0
    %602 = vmatprep.subr.mxu0 0.0
    %603 = vmatpush2.msra.mxu0 0.0
    %604 = vmatprep.subr.mxu0 0.0
    %605 = vmatpush2.msra.mxu0 0.0
    %606 = vmatprep.subr.mxu0 0.0
    %607 = vmatpush2.msra.mxu0 0.0
    %608 = vmatprep.subr.mxu0 0.0
    %609 = vmatpush2.msra.mxu0 0.0
    %610 = vmatprep.subr.mxu0 0.0
    %611 = vmatpush2.msra.mxu0 0.0
    %612 = vmatprep.subr.mxu0 0.0
    %613 = vmatpush2.msra.mxu0 0.0
    %614 = vmatprep.subr.mxu0 0.0
    %615 = vmatpush2.msra.mxu0 0.0
    %616 = vmatprep.subr.mxu0 0.0
    %617 = vmatpush2.msra.mxu0 0.0
    %618 = vmatprep.subr.mxu0 0.0
    %619 = vmatpush2.msra.mxu0 0.0
    %620 = vmatprep.subr.mxu0 0.0
    %621 = vmatpush2.msra.mxu0 0.0
    %622 = vmatprep.subr.mxu0 0.0
    %623 = vmatpush2.msra.mxu0 0.0
    %624 = vmatprep.subr.mxu0 0.0
    %625 = vmatpush2.msra.mxu0 0.0
    %626 = vmatprep.subr.mxu0 0.0
    %627 = vmatpush2.msra.mxu0 0.0
    %628 = vmatprep.subr.mxu0 0.0
    %629 = vmatpush2.msra.mxu0 0.0
    %630 = vmatprep.mubr.f32.mxu0 0.0
    %631 = vmatmul.mubr.f32.gmra.mxu0 %v480
    %v632 = vpop.f32.mrf.mxu0
    %v633 = vadd.f32 0.0, %v632
    %v634 = vpop.f32.mrf.mxu0
    %v635 = vadd.f32 0.0, %v634
    %636 = vdwg.mxu0
    %v637 = vld [vmem:[%s4] sm:$0xff]
    %v638 = vld [vmem:[%s5] sm:$0xff]
    %v639 = vadd.f32 %v562, %v564
    %v640 = vadd.f32 %v639, %v633
    %v641 = vadd.f32 %v640, %v635
    %642 = vadd.xlane.f32.xlu0 %v641
    %v643 = vpop.xlane.xlu0 %642
    %v644 = vmul.f32 %v562, %v562
    %v645 = vmul.f32 %v564, %v564
    %v646 = vmul.f32 %v633, %v633
    %v647 = vmul.f32 %v635, %v635
    %v648 = vadd.f32 %v644, %v645
    %v649 = vadd.f32 %v648, %v646
    %v650 = vadd.f32 %v649, %v647
    %651 = vadd.xlane.f32.xlu0 %v650
    %v652 = vpop.xlane.xlu0 %651
    %v653 = vmul.f32 %v643, 0.001953125
    %v654 = vmul.f32 %v652, 0.001953125
    %v655 = vmul.f32 %v653, %v653
    %v656 = vsub.f32 %v654, %v655
    %v657 = vsub.f32 %v562, %v653
    %v658 = vsub.f32 %v564, %v653
    %v659 = vsub.f32 %v633, %v653
    %v660 = vsub.f32 %v635, %v653
    %v661 = vadd.f32 %v656, 1e-05
    %v662 = vrsqrt.pop %v661
    %v663 = vmul.f32 %v657, %v662
    %v664 = vmul.f32 %v658, %v662
    %v665 = vmul.f32 %v659, %v662
    %v666 = vmul.f32 %v660, %v662
    %668 = vset.pattern.permute.xlu0 0
    %669 = vperm.xlu0 %668, %v637
    %v670 = vpop.permute.xlu0 %669
    %v672 = vmul.f32 %v663, %v670
    %v673 = vmul.f32 %v664, %v670
    %v674 = vmul.f32 %v665, %v670
    %v675 = vmul.f32 %v666, %v670
    %677 = vset.pattern.permute.xlu0 0
    %678 = vperm.xlu0 %677, %v638
    %v679 = vpop.permute.xlu0 %678
    %v681 = vadd.f32 %v672, %v679
    %v682 = vadd.f32 %v673, %v679
    %v683 = vadd.f32 %v674, %v679
    %v684 = vadd.f32 %v675, %v679
    %v685 = vmax.f32 %v681, 0.0
    %v686 = vmax.f32 %v682, 0.0
    %v687 = vmax.f32 %v683, 0.0
    %v688 = vmax.f32 %v684, 0.0
    %689 = vrot.lane.b32.xlu0 %v685, 17
    %v690 = vpop.permute.xlu0 %689
    %691 = vrot.lane.b32.xlu0 %v686, 17
    %v692 = vpop.permute.xlu0 %691
    %693 = vrot.lane.b32.xlu0 %v687, 17
    %v694 = vpop.permute.xlu0 %693
    %695 = vrot.lane.b32.xlu0 %v688, 17
    %v696 = vpop.permute.xlu0 %695
    %v697 = vsel %vm62, %v694, %v696
    %v698 = vsel %vm62, %v692, %v694
    %v699 = vsel %vm62, %v690, %v692
    %v700 = vsel %vm62, %v696, %v690
    %v701 = vld [vmem:[#allocation4] ss:$8 sm:$0xf]
    %v703 = vlaneseq
    %v704 = vshrl.u32 %v703, 7
    %v705 = vsub.s32 0, %v704
    %v706 = vrot.slane %v701, %v705
    %v707 = vlaneseq
    %v708 = vshrl.u32 %v707, 7
    %v709 = vsub.s32 1, %v708
    %v710 = vrot.slane %v701, %v709
    %v711 = vlaneseq
    %v712 = vshrl.u32 %v711, 7
    %v713 = vsub.s32 2, %v712
    %v714 = vrot.slane %v701, %v713
    %v715 = vlaneseq
    %v716 = vshrl.u32 %v715, 7
    %v717 = vsub.s32 3, %v716
    %v718 = vrot.slane %v701, %v717
    %v723 = vmul.f32 %v700, %v706
    %v724 = vmul.f32 %v699, %v710
    %v725 = vmul.f32 %v698, %v714
    %v726 = vmul.f32 %v697, %v718
    %727 = vst [vmem:[#allocation3] sm:$0xff] %v723
    %728 = vst [vmem:[#allocation3 + $0x8] sm:$0xff] %v724
    %729 = vst [vmem:[#allocation3 + $0x10] sm:$0xff] %v725
    %730 = vst [vmem:[#allocation3 + $0x18] sm:$0xff] %v726
    %731 = vrot.lane.b32.xlu0 %v685, 16
    %v732 = vpop.permute.xlu0 %731
    %733 = vrot.lane.b32.xlu0 %v686, 16
    %v734 = vpop.permute.xlu0 %733
    %735 = vrot.lane.b32.xlu0 %v687, 16
    %v736 = vpop.permute.xlu0 %735
    %737 = vrot.lane.b32.xlu0 %v688, 16
    %v738 = vpop.permute.xlu0 %737
    %v739 = vsel %vm105, %v736, %v738
    %v740 = vsel %vm105, %v734, %v736
    %v741 = vsel %vm105, %v732, %v734
    %v742 = vsel %vm105, %v738, %v732
    %v743 = vld [vmem:[%s110] ss:$8 sm:$0xf]
    %v745 = vlaneseq
    %v746 = vshrl.u32 %v745, 7
    %v747 = vsub.s32 0, %v746
    %v748 = vrot.slane %v743, %v747
    %v749 = vlaneseq
    %v750 = vshrl.u32 %v749, 7
    %v751 = vsub.s32 1, %v750
    %v752 = vrot.slane %v743, %v751
    %v753 = vlaneseq
    %v754 = vshrl.u32 %v753, 7
    %v755 = vsub.s32 2, %v754
    %v756 = vrot.slane %v743, %v755
    %v757 = vlaneseq
    %v758 = vshrl.u32 %v757, 7
    %v759 = vsub.s32 3, %v758
    %v760 = vrot.slane %v743, %v759
    %v765 = vmul.f32 %v742, %v748
    %v766 = vmul.f32 %v741, %v752
    %v767 = vmul.f32 %v740, %v756
    %v768 = vmul.f32 %v739, %v760
    %769 = vst [vmem:[#allocation3 + $0x20] sm:$0xff] %v765
    %770 = vst [vmem:[#allocation3 + $0x28] sm:$0xff] %v766
    %771 = vst [vmem:[#allocation3 + $0x30] sm:$0xff] %v767
    %772 = vst [vmem:[#allocation3 + $0x38] sm:$0xff] %v768
    %773 = vrot.lane.b32.xlu0 %v685, 15
    %v774 = vpop.permute.xlu0 %773
    %775 = vrot.lane.b32.xlu0 %v686, 15
    %v776 = vpop.permute.xlu0 %775
    %777 = vrot.lane.b32.xlu0 %v687, 15
    %v778 = vpop.permute.xlu0 %777
    %779 = vrot.lane.b32.xlu0 %v688, 15
    %v780 = vpop.permute.xlu0 %779
    %v781 = vsel %vm161, %v778, %v780
    %v782 = vsel %vm161, %v776, %v778
    %v783 = vsel %vm161, %v774, %v776
    %v784 = vsel %vm161, %v780, %v774
    %v785 = vld [vmem:[%s166] ss:$8 sm:$0xf]
    %v787 = vlaneseq
    %v788 = vshrl.u32 %v787, 7
    %v789 = vsub.s32 0, %v788
    %v790 = vrot.slane %v785, %v789
    %v791 = vlaneseq
    %v792 = vshrl.u32 %v791, 7
    %v793 = vsub.s32 1, %v792
    %v794 = vrot.slane %v785, %v793
    %v795 = vlaneseq
    %v796 = vshrl.u32 %v795, 7
    %v797 = vsub.s32 2, %v796
    %v798 = vrot.slane %v785, %v797
    %v799 = vlaneseq
    %v800 = vshrl.u32 %v799, 7
    %v801 = vsub.s32 3, %v800
    %v802 = vrot.slane %v785, %v801
    %v807 = vmul.f32 %v784, %v790
    %v808 = vmul.f32 %v783, %v794
    %v809 = vmul.f32 %v782, %v798
    %v810 = vmul.f32 %v781, %v802
    %811 = vst [vmem:[#allocation3 + $0x40] sm:$0xff] %v807
    %812 = vst [vmem:[#allocation3 + $0x48] sm:$0xff] %v808
    %813 = vst [vmem:[#allocation3 + $0x50] sm:$0xff] %v809
    %814 = vst [vmem:[#allocation3 + $0x58] sm:$0xff] %v810
    %815 = vrot.lane.b32.xlu0 %v685, 1
    %v816 = vpop.permute.xlu0 %815
    %817 = vrot.lane.b32.xlu0 %v686, 1
    %v818 = vpop.permute.xlu0 %817
    %819 = vrot.lane.b32.xlu0 %v687, 1
    %v820 = vpop.permute.xlu0 %819
    %821 = vrot.lane.b32.xlu0 %v688, 1
    %v822 = vpop.permute.xlu0 %821
    %v823 = vsel %vm205, %v820, %v822
    %v824 = vsel %vm205, %v818, %v820
    %v825 = vsel %vm205, %v816, %v818
    %v826 = vsel %vm205, %v822, %v816
    %v827 = vld [vmem:[%s210] ss:$8 sm:$0xf]
    %v829 = vlaneseq
    %v830 = vshrl.u32 %v829, 7
    %v831 = vsub.s32 0, %v830
    %v832 = vrot.slane %v827, %v831
    %v833 = vlaneseq
    %v834 = vshrl.u32 %v833, 7
    %v835 = vsub.s32 1, %v834
    %v836 = vrot.slane %v827, %v835
    %v837 = vlaneseq
    %v838 = vshrl.u32 %v837, 7
    %v839 = vsub.s32 2, %v838
    %v840 = vrot.slane %v827, %v839
    %v841 = vlaneseq
    %v842 = vshrl.u32 %v841, 7
    %v843 = vsub.s32 3, %v842
    %v844 = vrot.slane %v827, %v843
    %v849 = vmul.f32 %v826, %v832
    %v850 = vmul.f32 %v825, %v836
    %v851 = vmul.f32 %v824, %v840
    %v852 = vmul.f32 %v823, %v844
    %853 = vst [vmem:[#allocation3 + $0x60] sm:$0xff] %v849
    %854 = vst [vmem:[#allocation3 + $0x68] sm:$0xff] %v850
    %855 = vst [vmem:[#allocation3 + $0x70] sm:$0xff] %v851
    %856 = vst [vmem:[#allocation3 + $0x78] sm:$0xff] %v852
    %857 = vst [vmem:[#allocation3 + $0x80] sm:$0xff] %v685
    %858 = vst [vmem:[#allocation3 + $0x88] sm:$0xff] %v686
    %859 = vst [vmem:[#allocation3 + $0x90] sm:$0xff] %v687
    %860 = vst [vmem:[#allocation3 + $0x98] sm:$0xff] %v688
    %861 = vrot.lane.b32.xlu0 %v685, 127
    %v862 = vpop.permute.xlu0 %861
    %863 = vrot.lane.b32.xlu0 %v686, 127
    %v864 = vpop.permute.xlu0 %863
    %865 = vrot.lane.b32.xlu0 %v687, 127
    %v866 = vpop.permute.xlu0 %865
    %867 = vrot.lane.b32.xlu0 %v688, 127
    %v868 = vpop.permute.xlu0 %867
    %v869 = vsel %vm265, %v866, %v868
    %v870 = vsel %vm265, %v864, %v866
    %v871 = vsel %vm265, %v862, %v864
    %v872 = vsel %vm265, %v868, %v862
    %v873 = vld [vmem:[%s270] ss:$8 sm:$0xf]
    %v875 = vlaneseq
    %v876 = vshrl.u32 %v875, 7
    %v877 = vsub.s32 0, %v876
    %v878 = vrot.slane %v873, %v877
    %v879 = vlaneseq
    %v880 = vshrl.u32 %v879, 7
    %v881 = vsub.s32 1, %v880
    %v882 = vrot.slane %v873, %v881
    %v883 = vlaneseq
    %v884 = vshrl.u32 %v883, 7
    %v885 = vsub.s32 2, %v884
    %v886 = vrot.slane %v873, %v885
    %v887 = vlaneseq
    %v888 = vshrl.u32 %v887, 7
    %v889 = vsub.s32 3, %v888
    %v890 = vrot.slane %v873, %v889
    %v895 = vmul.f32 %v871, %v878
    %v896 = vmul.f32 %v870, %v882
    %v897 = vmul.f32 %v869, %v886
    %v898 = vmul.f32 %v872, %v890
    %899 = vst [vmem:[#allocation3 + $0xa0] sm:$0xff] %v895
    %900 = vst [vmem:[#allocation3 + $0xa8] sm:$0xff] %v896
    %901 = vst [vmem:[#allocation3 + $0xb0] sm:$0xff] %v897
    %902 = vst [vmem:[#allocation3 + $0xb8] sm:$0xff] %v898
    %903 = vrot.lane.b32.xlu0 %v685, 113
    %v904 = vpop.permute.xlu0 %903
    %905 = vrot.lane.b32.xlu0 %v686, 113
    %v906 = vpop.permute.xlu0 %905
    %907 = vrot.lane.b32.xlu0 %v687, 113
    %v908 = vpop.permute.xlu0 %907
    %909 = vrot.lane.b32.xlu0 %v688, 113
    %v910 = vpop.permute.xlu0 %909
    %v911 = vsel %vm321, %v908, %v910
    %v912 = vsel %vm321, %v906, %v908
    %v913 = vsel %vm321, %v904, %v906
    %v914 = vsel %vm321, %v910, %v904
    %v915 = vld [vmem:[%s326] ss:$8 sm:$0xf]
    %v917 = vlaneseq
    %v918 = vshrl.u32 %v917, 7
    %v919 = vsub.s32 0, %v918
    %v920 = vrot.slane %v915, %v919
    %v921 = vlaneseq
    %v922 = vshrl.u32 %v921, 7
    %v923 = vsub.s32 1, %v922
    %v924 = vrot.slane %v915, %v923
    %v925 = vlaneseq
    %v926 = vshrl.u32 %v925, 7
    %v927 = vsub.s32 2, %v926
    %v928 = vrot.slane %v915, %v927
    %v929 = vlaneseq
    %v930 = vshrl.u32 %v929, 7
    %v931 = vsub.s32 3, %v930
    %v932 = vrot.slane %v915, %v931
    %v937 = vmul.f32 %v913, %v920
    %v938 = vmul.f32 %v912, %v924
    %v939 = vmul.f32 %v911, %v928
    %v940 = vmul.f32 %v914, %v932
    %941 = vst [vmem:[#allocation3 + $0xc0] sm:$0xff] %v937
    %942 = vst [vmem:[#allocation3 + $0xc8] sm:$0xff] %v938
    %943 = vst [vmem:[#allocation3 + $0xd0] sm:$0xff] %v939
    %944 = vst [vmem:[#allocation3 + $0xd8] sm:$0xff] %v940
    %945 = vrot.lane.b32.xlu0 %v685, 112
    %v946 = vpop.permute.xlu0 %945
    %947 = vrot.lane.b32.xlu0 %v686, 112
    %v948 = vpop.permute.xlu0 %947
    %949 = vrot.lane.b32.xlu0 %v687, 112
    %v950 = vpop.permute.xlu0 %949
    %951 = vrot.lane.b32.xlu0 %v688, 112
    %v952 = vpop.permute.xlu0 %951
    %v953 = vsel %vm365, %v950, %v952
    %v954 = vsel %vm365, %v948, %v950
    %v955 = vsel %vm365, %v946, %v948
    %v956 = vsel %vm365, %v952, %v946
    %v957 = vld [vmem:[%s370] ss:$8 sm:$0xf]
    %v959 = vlaneseq
    %v960 = vshrl.u32 %v959, 7
    %v961 = vsub.s32 0, %v960
    %v962 = vrot.slane %v957, %v961
    %v963 = vlaneseq
    %v964 = vshrl.u32 %v963, 7
    %v965 = vsub.s32 1, %v964
    %v966 = vrot.slane %v957, %v965
    %v967 = vlaneseq
    %v968 = vshrl.u32 %v967, 7
    %v969 = vsub.s32 2, %v968
    %v970 = vrot.slane %v957, %v969
    %v971 = vlaneseq
    %v972 = vshrl.u32 %v971, 7
    %v973 = vsub.s32 3, %v972
    %v974 = vrot.slane %v957, %v973
    %v979 = vmul.f32 %v955, %v962
    %v980 = vmul.f32 %v954, %v966
    %v981 = vmul.f32 %v953, %v970
    %v982 = vmul.f32 %v956, %v974
    %983 = vst [vmem:[#allocation3 + $0xe0] sm:$0xff] %v979
    %984 = vst [vmem:[#allocation3 + $0xe8] sm:$0xff] %v980
    %985 = vst [vmem:[#allocation3 + $0xf0] sm:$0xff] %v981
    %986 = vst [vmem:[#allocation3 + $0xf8] sm:$0xff] %v982
    %987 = vrot.lane.b32.xlu0 %v685, 111
    %v988 = vpop.permute.xlu0 %987
    %989 = vrot.lane.b32.xlu0 %v686, 111
    %v990 = vpop.permute.xlu0 %989
    %991 = vrot.lane.b32.xlu0 %v687, 111
    %v992 = vpop.permute.xlu0 %991
    %993 = vrot.lane.b32.xlu0 %v688, 111
    %v994 = vpop.permute.xlu0 %993
    %v995 = vsel %vm421, %v992, %v994
    %v996 = vsel %vm421, %v990, %v992
    %v997 = vsel %vm421, %v988, %v990
    %v998 = vsel %vm421, %v994, %v988
    %v999 = vld [vmem:[%s426] ss:$8 sm:$0xf]
    %v1001 = vlaneseq
    %v1002 = vshrl.u32 %v1001, 7
    %v1003 = vsub.s32 0, %v1002
    %v1004 = vrot.slane %v999, %v1003
    %v1005 = vlaneseq
    %v1006 = vshrl.u32 %v1005, 7
    %v1007 = vsub.s32 1, %v1006
    %v1008 = vrot.slane %v999, %v1007
    %v1009 = vlaneseq
    %v1010 = vshrl.u32 %v1009, 7
    %v1011 = vsub.s32 2, %v1010
    %v1012 = vrot.slane %v999, %v1011
    %v1013 = vlaneseq
    %v1014 = vshrl.u32 %v1013, 7
    %v1015 = vsub.s32 3, %v1014
    %v1016 = vrot.slane %v999, %v1015
    %v1021 = vmul.f32 %v997, %v1004
    %v1022 = vmul.f32 %v996, %v1008
    %v1023 = vmul.f32 %v995, %v1012
    %v1024 = vmul.f32 %v998, %v1016
    %1025 = vst [vmem:[#allocation3 + $0x100] sm:$0xff] %v1021
    %1026 = vst [vmem:[#allocation3 + $0x108] sm:$0xff] %v1022
    %1027 = vst [vmem:[#allocation3 + $0x110] sm:$0xff] %v1023
    %1028 = vst [vmem:[#allocation3 + $0x118] sm:$0xff] %v1024
    %v1029 = vld [vmem:[%s3] sm:$0xf]
    %v1030 = vld [vmem:[#allocation3] sm:$0xff]
    %v1031 = vld [vmem:[#allocation3 + $0x8] sm:$0xff]
    %v1032 = vld [vmem:[#allocation3 + $0x10] sm:$0xff]
    %v1033 = vld [vmem:[#allocation3 + $0x18] sm:$0xff]
    %v1034 = vld [vmem:[#allocation3 + $0x20] sm:$0xff]
    %v1035 = vld [vmem:[#allocation3 + $0x28] sm:$0xff]
    %v1036 = vld [vmem:[#allocation3 + $0x30] sm:$0xff]
    %v1037 = vld [vmem:[#allocation3 + $0x38] sm:$0xff]
    %v1038 = vld [vmem:[#allocation3 + $0x40] sm:$0xff]
    %v1039 = vld [vmem:[#allocation3 + $0x48] sm:$0xff]
    %v1040 = vld [vmem:[#allocation3 + $0x50] sm:$0xff]
    %v1041 = vld [vmem:[#allocation3 + $0x58] sm:$0xff]
    %v1042 = vld [vmem:[#allocation3 + $0x60] sm:$0xff]
    %v1043 = vld [vmem:[#allocation3 + $0x68] sm:$0xff]
    %v1044 = vld [vmem:[#allocation3 + $0x70] sm:$0xff]
    %v1045 = vld [vmem:[#allocation3 + $0x78] sm:$0xff]
    %v1046 = vld [vmem:[#allocation3 + $0x80] sm:$0xff]
    %v1047 = vld [vmem:[#allocation3 + $0x88] sm:$0xff]
    %v1048 = vld [vmem:[#allocation3 + $0x90] sm:$0xff]
    %v1049 = vld [vmem:[#allocation3 + $0x98] sm:$0xff]
    %v1050 = vld [vmem:[#allocation3 + $0xa0] sm:$0xff]
    %v1051 = vld [vmem:[#allocation3 + $0xa8] sm:$0xff]
    %v1052 = vld [vmem:[#allocation3 + $0xb0] sm:$0xff]
    %v1053 = vld [vmem:[#allocation3 + $0xb8] sm:$0xff]
    %v1054 = vld [vmem:[#allocation3 + $0xc0] sm:$0xff]
    %v1055 = vld [vmem:[#allocation3 + $0xc8] sm:$0xff]
    %v1056 = vld [vmem:[#allocation3 + $0xd0] sm:$0xff]
    %v1057 = vld [vmem:[#allocation3 + $0xd8] sm:$0xff]
    %v1058 = vld [vmem:[#allocation3 + $0xe0] sm:$0xff]
    %v1059 = vld [vmem:[#allocation3 + $0xe8] sm:$0xff]
    %v1060 = vld [vmem:[#allocation3 + $0xf0] sm:$0xff]
    %v1061 = vld [vmem:[#allocation3 + $0xf8] sm:$0xff]
    %v1062 = vld [vmem:[#allocation3 + $0x100] sm:$0xff]
    %v1063 = vld [vmem:[#allocation3 + $0x108] sm:$0xff]
    %v1064 = vld [vmem:[#allocation3 + $0x110] sm:$0xff]
    %v1065 = vld [vmem:[#allocation3 + $0x118] sm:$0xff]
    %vm1066 = vcmask 588800
    %v1068 = vsel %vm1066, %v1029, 0
    %1070 = vmatprep.subr.mxu0 0.0
    %1071 = vmatpush1.msra.mxu0 0.0
    %1072 = vmatprep.subr.mxu0 0.0
    %1073 = vmatpush1.msra.mxu0 0.0
    %1074 = vmatprep.subr.mxu0 0.0
    %1075 = vmatpush1.msra.mxu0 0.0
    %1076 = vmatprep.subr.mxu0 0.0
    %1077 = vmatpush1.msra.mxu0 0.0
    %1078 = vmatprep.subr.mxu0 0.0
    %1079 = vmatpush1.msra.mxu0 0.0
    %1080 = vmatprep.subr.mxu0 0.0
    %1081 = vmatpush1.msra.mxu0 0.0
    %1082 = vmatprep.subr.mxu0 0.0
    %1083 = vmatpush1.msra.mxu0 0.0
    %1084 = vmatprep.subr.mxu0 %v1063
    %1085 = vmatpush1.msra.mxu0 %v1062
    %1086 = vmatprep.subr.mxu0 %v1059
    %1087 = vmatpush1.msra.mxu0 %v1058
    %1088 = vmatprep.subr.mxu0 %v1055
    %1089 = vmatpush1.msra.mxu0 %v1054
    %1090 = vmatprep.subr.mxu0 %v1051
    %1091 = vmatpush1.msra.mxu0 %v1050
    %1092 = vmatprep.subr.mxu0 %v1047
    %1093 = vmatpush1.msra.mxu0 %v1046
    %1094 = vmatprep.subr.mxu0 %v1043
    %1095 = vmatpush1.msra.mxu0 %v1042
    %1096 = vmatprep.subr.mxu0 %v1039
    %1097 = vmatpush1.msra.mxu0 %v1038
    %1098 = vmatprep.subr.mxu0 %v1035
    %1099 = vmatpush1.msra.mxu0 %v1034
    %1100 = vmatprep.subr.mxu0 %v1031
    %1101 = vmatpush1.msra.mxu0 %v1030
    %1102 = vmatprep.subr.mxu0 0.0
    %1103 = vmatpush2.msra.mxu0 0.0
    %1104 = vmatprep.subr.mxu0 0.0
    %1105 = vmatpush2.msra.mxu0 0.0
    %1106 = vmatprep.subr.mxu0 0.0
    %1107 = vmatpush2.msra.mxu0 0.0
    %1108 = vmatprep.subr.mxu0 0.0
    %1109 = vmatpush2.msra.mxu0 0.0
    %1110 = vmatprep.subr.mxu0 0.0
    %1111 = vmatpush2.msra.mxu0 0.0
    %1112 = vmatprep.subr.mxu0 0.0
    %1113 = vmatpush2.msra.mxu0 0.0
    %1114 = vmatprep.subr.mxu0 0.0
    %1115 = vmatpush2.msra.mxu0 0.0
    %1116 = vmatprep.subr.mxu0 0.0
    %1117 = vmatpush2.msra.mxu0 0.0
    %1118 = vmatprep.subr.mxu0 0.0
    %1119 = vmatpush2.msra.mxu0 0.0
    %1120 = vmatprep.subr.mxu0 0.0
    %1121 = vmatpush2.msra.mxu0 0.0
    %1122 = vmatprep.subr.mxu0 0.0
    %1123 = vmatpush2.msra.mxu0 0.0
    %1124 = vmatprep.subr.mxu0 0.0
    %1125 = vmatpush2.msra.mxu0 0.0
    %1126 = vmatprep.subr.mxu0 0.0
    %1127 = vmatpush2.msra.mxu0 0.0
    %1128 = vmatprep.subr.mxu0 0.0
    %1129 = vmatpush2.msra.mxu0 0.0
    %1130 = vmatprep.subr.mxu0 0.0
    %1131 = vmatpush2.msra.mxu0 0.0
    %1132 = vmatprep.subr.mxu0 0.0
    %1133 = vmatpush2.msra.mxu0 0.0
    %1134 = vmatprep.mubr.f32.mxu0 0.0
    %1135 = vmatmul.mubr.f32.gmra.mxu0 %v1068
    %v1136 = vpop.f32.mrf.mxu0
    %v1137 = vadd.f32 0.0, %v1136
    %v1138 = vpop.f32.mrf.mxu0
    %v1139 = vadd.f32 0.0, %v1138
    %1140 = vdwg.mxu0
    %1141 = vmatprep.subr.mxu0 0.0
    %1142 = vmatpush1.msra.mxu0 0.0
    %1143 = vmatprep.subr.mxu0 0.0
    %1144 = vmatpush1.msra.mxu0 0.0
    %1145 = vmatprep.subr.mxu0 0.0
    %1146 = vmatpush1.msra.mxu0 0.0
    %1147 = vmatprep.subr.mxu0 0.0
    %1148 = vmatpush1.msra.mxu0 0.0
    %1149 = vmatprep.subr.mxu0 0.0
    %1150 = vmatpush1.msra.mxu0 0.0
    %1151 = vmatprep.subr.mxu0 0.0
    %1152 = vmatpush1.msra.mxu0 0.0
    %1153 = vmatprep.subr.mxu0 0.0
    %1154 = vmatpush1.msra.mxu0 0.0
    %1155 = vmatprep.subr.mxu0 %v1065
    %1156 = vmatpush1.msra.mxu0 %v1064
    %1157 = vmatprep.subr.mxu0 %v1061
    %1158 = vmatpush1.msra.mxu0 %v1060
    %1159 = vmatprep.subr.mxu0 %v1057
    %1160 = vmatpush1.msra.mxu0 %v1056
    %1161 = vmatprep.subr.mxu0 %v1053
    %1162 = vmatpush1.msra.mxu0 %v1052
    %1163 = vmatprep.subr.mxu0 %v1049
    %1164 = vmatpush1.msra.mxu0 %v1048
    %1165 = vmatprep.subr.mxu0 %v1045
    %1166 = vmatpush1.msra.mxu0 %v1044
    %1167 = vmatprep.subr.mxu0 %v1041
    %1168 = vmatpush1.msra.mxu0 %v1040
    %1169 = vmatprep.subr.mxu0 %v1037
    %1170 = vmatpush1.msra.mxu0 %v1036
    %1171 = vmatprep.subr.mxu0 %v1033
    %1172 = vmatpush1.msra.mxu0 %v1032
    %1173 = vmatprep.subr.mxu0 0.0
    %1174 = vmatpush2.msra.mxu0 0.0
    %1175 = vmatprep.subr.mxu0 0.0
    %1176 = vmatpush2.msra.mxu0 0.0
    %1177 = vmatprep.subr.mxu0 0.0
    %1178 = vmatpush2.msra.mxu0 0.0
    %1179 = vmatprep.subr.mxu0 0.0
    %1180 = vmatpush2.msra.mxu0 0.0
    %1181 = vmatprep.subr.mxu0 0.0
    %1182 = vmatpush2.msra.mxu0 0.0
    %1183 = vmatprep.subr.mxu0 0.0
    %1184 = vmatpush2.msra.mxu0 0.0
    %1185 = vmatprep.subr.mxu0 0.0
    %1186 = vmatpush2.msra.mxu0 0.0
    %1187 = vmatprep.subr.mxu0 0.0
    %1188 = vmatpush2.msra.mxu0 0.0
    %1189 = vmatprep.subr.mxu0 0.0
    %1190 = vmatpush2.msra.mxu0 0.0
    %1191 = vmatprep.subr.mxu0 0.0
    %1192 = vmatpush2.msra.mxu0 0.0
    %1193 = vmatprep.subr.mxu0 0.0
    %1194 = vmatpush2.msra.mxu0 0.0
    %1195 = vmatprep.subr.mxu0 0.0
    %1196 = vmatpush2.msra.mxu0 0.0
    %1197 = vmatprep.subr.mxu0 0.0
    %1198 = vmatpush2.msra.mxu0 0.0
    %1199 = vmatprep.subr.mxu0 0.0
    %1200 = vmatpush2.msra.mxu0 0.0
    %1201 = vmatprep.subr.mxu0 0.0
    %1202 = vmatpush2.msra.mxu0 0.0
    %1203 = vmatprep.subr.mxu0 0.0
    %1204 = vmatpush2.msra.mxu0 0.0
    %1205 = vmatprep.mubr.f32.mxu0 0.0
    %1206 = vmatmul.mubr.f32.gmra.mxu0 %v1068
    %v1207 = vpop.f32.mrf.mxu0
    %v1208 = vadd.f32 0.0, %v1207
    %v1209 = vpop.f32.mrf.mxu0
    %v1210 = vadd.f32 0.0, %v1209
    %1211 = vdwg.mxu0
    %v1212 = vld [vmem:[%s6] sm:$0xf]
    %v1213 = vld [vmem:[%s7] sm:$0xf]
    %v1214 = vsel %vm482, %v1137, 0.0
    %v1215 = vsel %vm482, %v1139, 0.0
    %v1216 = vadd.f32 %v1214, %v1215
    %v1217 = vsel %vm482, %v1208, 0.0
    %v1218 = vadd.f32 %v1216, %v1217
    %v1219 = vsel %vm482, %v1210, 0.0
    %v1220 = vadd.f32 %v1218, %v1219
    %1221 = vadd.xlane.f32.xlu0 %v1220
    %v1222 = vpop.xlane.xlu0 %1221
    %v1223 = vmul.f32 %v1137, %v1137
    %v1224 = vmul.f32 %v1139, %v1139
    %v1225 = vmul.f32 %v1208, %v1208
    %v1226 = vmul.f32 %v1210, %v1210
    %v1227 = vsel %vm482, %v1223, 0.0
    %v1228 = vsel %vm482, %v1224, 0.0
    %v1229 = vadd.f32 %v1227, %v1228
    %v1230 = vsel %vm482, %v1225, 0.0
    %v1231 = vadd.f32 %v1229, %v1230
    %v1232 = vsel %vm482, %v1226, 0.0
    %v1233 = vadd.f32 %v1231, %v1232
    %1234 = vadd.xlane.f32.xlu0 %v1233
    %v1235 = vpop.xlane.xlu0 %1234
    %v1236 = vmul.f32 %v1222, 0.001953125
    %v1237 = vmul.f32 %v1235, 0.001953125
    %v1238 = vmul.f32 %v1236, %v1236
    %v1239 = vsub.f32 %v1237, %v1238
    %v1240 = vsub.f32 %v1137, %v1236
    %v1241 = vsub.f32 %v1139, %v1236
    %v1242 = vsub.f32 %v1208, %v1236
    %v1243 = vsub.f32 %v1210, %v1236
    %v1244 = vadd.f32 %v1239, 1e-05
    %v1245 = vrsqrt.pop %v1244
    %v1246 = vmul.f32 %v1240, %v1245
    %v1247 = vmul.f32 %v1241, %v1245
    %v1248 = vmul.f32 %v1242, %v1245
    %v1249 = vmul.f32 %v1243, %v1245
    %1251 = vset.pattern.permute.xlu0 0
    %1252 = vperm.xlu0 %1251, %v1212
    %v1253 = vpop.permute.xlu0 %1252
    %v1255 = vmul.f32 %v1246, %v1253
    %v1256 = vmul.f32 %v1247, %v1253
    %v1257 = vmul.f32 %v1248, %v1253
    %v1258 = vmul.f32 %v1249, %v1253
    %1260 = vset.pattern.permute.xlu0 0
    %1261 = vperm.xlu0 %1260, %v1213
    %v1262 = vpop.permute.xlu0 %1261
    %v1264 = vadd.f32 %v1255, %v1262
    %v1265 = vadd.f32 %v1256, %v1262
    %v1266 = vadd.f32 %v1257, %v1262
    %v1267 = vadd.f32 %v1258, %v1262
    %v1268 = vadd.f32 %v1264, %v44
    %v1269 = vadd.f32 %v1265, %v48
    %v1270 = vadd.f32 %v1266, %v45
    %v1271 = vadd.f32 %v1267, %v49
    %v1272 = vmax.f32 %v1268, 0.0
    %v1273 = vmax.f32 %v1269, 0.0
    %v1274 = vmax.f32 %v1270, 0.0
    %v1275 = vmax.f32 %v1271, 0.0
    %v1280 = vcombine.low %v1272, %v1273
    %v1281 = vcombine.low %v1274, %v1275
    %1284 = vst [vmem:[#allocation7] sm:$0xff] %v1280
    %1285 = vst [vmem:[#allocation7 + $0x8] sm:$0xff] %v1281
    // Predicated region
    $region38: #{tpu_custom_call.1} parent=1 // pred_check
      _
    $region39: #{tpu_custom_call.1} parent=1 // pred_check_branch
      %1287 = sbr.rel (0) target = $region41
    $region40: #{tpu_custom_call.1} parent=1 // pred_region
      %s1289 = ssub.s32 256, 256
      %1290 = vsyncadd [#allocation6], %s1289
      %s1292 = sshll.u32 [#allocation7], 4
      %s1293 = int_to_ptr.vmem [resolvable:$true] %s1292
      %1295 = dma.vmem_to_hbm [thread:$0]  %s1293, 256, %s8, [#allocation6]
    $region41: #{tpu_custom_call.1} parent=1 // pred_fallthru
      _
    // Predicated region
    $region42: #{tpu_custom_call.1} parent=1 // pred_check
      _
    $region43: #{tpu_custom_call.1} parent=1 // pred_check_branch
      %1297 = sbr.rel (0) target = $region45
    $region44: #{tpu_custom_call.1} parent=1 // pred_region
      %1298 = dma.done [#allocation6], 256
    $region45: #{tpu_custom_call.1} parent=1 // pred_fallthru
      _
    %1299 = vsyncpa [#allocation5], 1
    %1300 = vsyncpa [#allocation6], 1

</llo_original>
